<compile_context>
chip_gen: v5e
topology: v5e:2x2
jax: 0.10.0
libtpu: 0.0.40
codegen_flags: <defaults>
</compile_context>

<pallas_src>
import numpy as np
import jax
import jax.numpy as jnp
from jax.experimental import pallas as pl
from jax.experimental.pallas import tpu as pltpu


# ------------------------------ configuration -------------------------------

B = 2                      # batch (packed onto lanes, folded into one grid step)
CIN, COUT = 2, 8
K1, K2 = (2, 3), (1, 3)
SCALE = 2
T = 8                      # time frames (unchanged by every stage; stride is (1, 2))
F0 = 32                    # input frequency bins
EPS = 1e-5


def _conv_w(w, k):         # Conv2d, VALID, freq stride 2
    return (w - k) // 2 + 1


F1 = _conv_w(F0, K1[1])    # 15  after in_conv (GateConv2d)
F2 = _conv_w(F1, K2[1])    # 7   after enco0
F3 = _conv_w(F2, K2[1])    # 3   after enco1

CT = COUT * T              # 64
BCT = B * COUT * T         # 128  (lane width of every activation slab)

# per layer: (sel-slab row0, per-tap row pitch, F_out, F_in, transposed conv?)
_LAYERS = (
    (0,   16, F1, F0, False),   # in_conv (GateConv2d)
    (48,   8, F2, F1, False),   # enco0
    (72,   8, F3, F2, False),   # enco1
    (96,   8, F2, F3, True),    # deco0 ('add' unit)
    (120, 16, F1, F2, True),    # deco1 ('cat' unit)
)
_SEL_ROWS = 168

# row layout of the packed "vg" constant slab (width 2*BCT = 256)
_VG_BIAS_IN = 0            # (1, 256): in_conv bias, [out-half | gate-half]
_VG_LAYER0 = 1             # 4 rows per layer: [bias, gamma, beta, alpha] (cols 0:128)
_VG_GM = 24                # (128, 128): InstanceNorm (batch, channel) group-sum matrix
_VG_TOTAL = _VG_GM + BCT   # 152


def _build_sel_slab():
    """Precomputed 0/1 frequency-selection matrices, one 8-aligned block per tap."""
    s = np.zeros((_SEL_ROWS, F0), np.float32)
    for (r0, pitch, fo, fi, tr) in _LAYERS:
        r = np.arange(fo)[:, None]
        c = np.arange(fi)[None, :]
        for dw in range(3):
            blk = (r == 2 * c + dw) if tr else (c == 2 * r + dw)
            s[r0 + dw * pitch:r0 + dw * pitch + fo, :fi] = blk.astype(np.float32)
    return jnp.asarray(s)


_SEL_SLAB = _build_sel_slab()


# ------------------------------ Pallas kernel --------------------------------

def _dot(a, b):
    # default (single-pass) MXU precision, f32 accumulation
    return jnp.dot(a, b, preferred_element_type=jnp.float32)


def _en_unet_kernel(x_ref, m_in_ref, m_main_ref, sel_ref, vg_ref, o_ref):
    gm = vg_ref[_VG_GM:_VG_GM + BCT, 0:BCT]                       # (128, 128)

    def tap_sum(z, layer, cols):
        """sum_dw Sel_dw @ z[:, dw*cols:(dw+1)*cols] -> (F_out, cols)."""
        r0, pitch, fo, fi, _ = _LAYERS[layer]
        acc = None
        for dw in range(3):
            s = sel_ref[r0 + dw * pitch:r0 + dw * pitch + fo, 0:fi]
            y = _dot(s, z[:, dw * cols:(dw + 1) * cols])
            acc = y if acc is None else acc + y
        return acc

    def bias_row(layer):
        r = _VG_LAYER0 + 4 * layer
        return vg_ref[r:r + 1, 0:BCT]

    def in_prelu(y, layer):
        """InstanceNorm2d(affine=True) + PReLU on an (F, B*COUT*T) slab."""
        r = _VG_LAYER0 + 4 * layer
        gamma = vg_ref[r + 1:r + 2, 0:BCT]
        beta = vg_ref[r + 2:r + 3, 0:BCT]
        alpha = vg_ref[r + 3:r + 4, 0:BCT]
        sums = jnp.concatenate(
            [jnp.sum(y, axis=0, keepdims=True),
             jnp.sum(y * y, axis=0, keepdims=True)], axis=0)      # (2, 128)
        stats = _dot(sums, gm) * (1.0 / (T * y.shape[0]))         # (2, 128)
        mean = stats[0:1, :]
        var = stats[1:2, :] - mean * mean
        z = (y - mean) * jax.lax.rsqrt(var + EPS) * gamma + beta
        return jnp.where(z >= 0.0, z, alpha * z)

    # ---- in_conv: GateConv2d (causal time pad folded into m_in) + IN + PReLU
    x = x_ref[...]                                                # (F0, B*CIN*T)
    z = _dot(x, m_in_ref[...])                                    # (F0, 3*2*BCT)
    pre = tap_sum(z, 0, 2 * BCT) + vg_ref[_VG_BIAS_IN:_VG_BIAS_IN + 1, :]  # (F1, 256)
    gate = pl.reciprocal(1.0 + jnp.exp(-pre[:, BCT:2 * BCT]), approx=True)
    resi = in_prelu(pre[:, 0:BCT] * gate, 0)                      # (F1, 128)

    # ---- encoder -------------------------------------------------------------
    e0 = in_prelu(tap_sum(_dot(resi, m_main_ref[0:BCT, :]), 1, BCT) + bias_row(1), 1)
    e1 = in_prelu(tap_sum(_dot(e0, m_main_ref[BCT:2 * BCT, :]), 2, BCT) + bias_row(2), 2)

    # ---- decoder ('cat' skip = two M slabs, no in-kernel concatenate) --------
    d0 = in_prelu(tap_sum(_dot(e1, m_main_ref[2 * BCT:3 * BCT, :]), 3, BCT)
                  + bias_row(3), 3)
    zc = (_dot(d0, m_main_ref[3 * BCT:4 * BCT, :])
          + _dot(e0, m_main_ref[4 * BCT:5 * BCT, :]))             # (F2, 384)
    d1 = in_prelu(tap_sum(zc, 4, BCT) + bias_row(4), 4)           # (F1, 128)

    # ---- residual add, lane-dense full-width store ----------------------------
    o_ref[...] = resi + d1


# --------------------- wrapper-side parameter expansion -----------------------

def _mt_conv_taps(w, causal):
    """Conv2d weight (Co,Ci,kh,kw) -> per-tap right-multiply mats (Ci*T, Co*T)."""
    co, ci, kh, kw = w.shape
    taps = []
    for dw in range(kw):
        m = jnp.zeros((ci * T, co * T), jnp.float32)
        for dh in range(kh):
            shift = dh - (kh - 1) if causal else dh
            m = m + jnp.kron(w[:, :, dh, dw].T.astype(jnp.float32),
                             jnp.eye(T, k=-shift, dtype=jnp.float32))
        taps.append(m)
    return taps


def _mt_deconv_taps(w):
    """ConvTranspose2d weight (Ci,Co,1,kw) -> per-tap right-multiply mats (Ci*T, Co*T)."""
    kw = w.shape[3]
    eye_t = jnp.eye(T, dtype=jnp.float32)
    return [jnp.kron(w[:, :, 0, dw].astype(jnp.float32), eye_t) for dw in range(kw)]


def _bdiag(m):
    """Per-batch mixing matrix -> block-diagonal over the packed batch lanes."""
    return jnp.kron(jnp.eye(B, dtype=jnp.float32), m)


def _mcat(taps):
    """Lane-stack the per-tap (batch block-diag) matrices: (B*Ci*T, 3*B*Co*T)."""
    return jnp.concatenate([_bdiag(t) for t in taps], axis=1)


def _row(v):
    """Per-channel (COUT,) vector -> per-lane row (1, B*COUT*T)."""
    return jnp.tile(jnp.repeat(v.astype(jnp.float32), T), B)[None, :]


@jax.jit
def en_unet_forward(x, p):
    # activations use the lane-dense (F, batch*channel*time) layout
    x2 = x.reshape(B * CIN * T, F0).T.astype(jnp.float32)            # (F0, 32)

    # in_conv M: per tap [out-half | gate-half], batch block-diag    -> (32, 768)
    m_in = jnp.concatenate(
        [jnp.concatenate([_bdiag(mt[:, :CT]), _bdiag(mt[:, CT:])], axis=1)
         for mt in _mt_conv_taps(p["in_w"], causal=True)], axis=1)

    # enco / deco M slabs; deco1 split into its d0-rows and e0-rows  -> (640, 384)
    m_main = jnp.concatenate(
        [_mcat(_mt_conv_taps(p["enco0_w"], False)),
         _mcat(_mt_conv_taps(p["enco1_w"], False)),
         _mcat(_mt_deconv_taps(p["deco0_w"])),
         _mcat(_mt_deconv_taps(p["deco1_w"][:COUT])),
         _mcat(_mt_deconv_taps(p["deco1_w"][COUT:]))], axis=0)

    # packed per-lane constants (biases, IN affine, PReLU) + IN group-sum matrix
    lower = jnp.concatenate(
        [jnp.zeros((1, BCT), jnp.float32),
         _row(p["in_gamma"]), _row(p["in_beta"]), _row(p["in_alpha"]),
         _row(p["enco0_b"]), _row(p["enco0_gamma"]), _row(p["enco0_beta"]), _row(p["enco0_alpha"]),
         _row(p["enco1_b"]), _row(p["enco1_gamma"]), _row(p["enco1_beta"]), _row(p["enco1_alpha"]),
         _row(p["deco0_b"]), _row(p["deco0_gamma"]), _row(p["deco0_beta"]), _row(p["deco0_alpha"]),
         _row(p["deco1_b"]), _row(p["deco1_gamma"]), _row(p["deco1_beta"]), _row(p["deco1_alpha"]),
         jnp.zeros((3, BCT), jnp.float32),
         jnp.kron(jnp.eye(B * COUT, dtype=jnp.float32),
                  jnp.ones((T, T), jnp.float32))], axis=0)            # (151, 128)
    row0 = jnp.concatenate([_row(p["in_b"][:COUT]), _row(p["in_b"][COUT:])], axis=1)
    vg = jnp.concatenate([row0, jnp.pad(lower, ((0, 0), (0, BCT)))], axis=0)  # (152, 256)

    def full_spec(shape):
        zeros = (0,) * len(shape)
        return pl.BlockSpec(tuple(shape), lambda i: zeros)

    args = (x2, m_in, m_main, _SEL_SLAB, vg)
    out = pl.pallas_call(
        _en_unet_kernel,
        out_shape=jax.ShapeDtypeStruct((F1, BCT), jnp.float32),
        grid=(1,),                                  # batch folded: one grid step
        in_specs=[full_spec(a.shape) for a in args],
        out_specs=full_spec((F1, BCT)),
        compiler_params=pltpu.CompilerParams(dimension_semantics=("arbitrary",)),
        cost_estimate=pl.CostEstimate(flops=7_000_000, transcendentals=5_000,
                                      bytes_accessed=1_300_000),
    )(*args)

    # (F1, B*COUT*T) -> (B, COUT, T, F1)   (NCHW like PyTorch)
    return jnp.transpose(out.reshape(F1, B, COUT, T), (1, 2, 3, 0))


# ------------------------------ parameters ------------------------------------

def init_params(key):
    ks = jax.random.split(key, 12)
    p = {}
    p["in_w"] = 0.1 * jax.random.normal(ks[0], (2 * COUT, CIN, K1[0], K1[1]), jnp.float32)
    p["in_b"] = 0.05 * jax.random.normal(ks[1], (2 * COUT,), jnp.float32)
    p["in_gamma"] = jnp.ones((COUT,), jnp.float32)
    p["in_beta"] = jnp.zeros((COUT,), jnp.float32)
    p["in_alpha"] = 0.25 * jnp.ones((COUT,), jnp.float32)
    for i in range(SCALE):
        p[f"enco{i}_w"] = 0.1 * jax.random.normal(ks[2 + 2 * i], (COUT, COUT, K2[0], K2[1]), jnp.float32)
        p[f"enco{i}_b"] = 0.05 * jax.random.normal(ks[3 + 2 * i], (COUT,), jnp.float32)
        p[f"enco{i}_gamma"] = jnp.ones((COUT,), jnp.float32)
        p[f"enco{i}_beta"] = jnp.zeros((COUT,), jnp.float32)
        p[f"enco{i}_alpha"] = 0.25 * jnp.ones((COUT,), jnp.float32)
    for i in range(SCALE):
        cin_i = COUT if i == 0 else 2 * COUT        # deco[0]: 'add' unit, deco[1]: 'cat'
        p[f"deco{i}_w"] = 0.1 * jax.random.normal(ks[6 + 2 * i], (cin_i, COUT, K2[0], K2[1]), jnp.float32)
        p[f"deco{i}_b"] = 0.05 * jax.random.normal(ks[7 + 2 * i], (COUT,), jnp.float32)
        p[f"deco{i}_gamma"] = jnp.ones((COUT,), jnp.float32)
        p[f"deco{i}_beta"] = jnp.zeros((COUT,), jnp.float32)
        p[f"deco{i}_alpha"] = 0.25 * jnp.ones((COUT,), jnp.float32)
    return p


# ---------------------------- pure-JAX reference ------------------------------

def _ref_forward(x, p):
    """PyTorch-semantics reference (XLA, Precision.HIGHEST) for the self-check."""
    prec = jax.lax.Precision.HIGHEST

    def conv2d(h, w, b, stride):
        y = jax.lax.conv_general_dilated(
            h, w, stride, "VALID",
            dimension_numbers=("NCHW", "OIHW", "NCHW"), precision=prec)
        return y + b.reshape(1, -1, 1, 1)

    def conv_t2d(h, w, b, stride):
        kh, kw = w.shape[2], w.shape[3]
        wc = jnp.flip(w, (2, 3)).transpose(1, 0, 2, 3)
        y = jax.lax.conv_general_dilated(
            h, wc, (1, 1), [(kh - 1, kh - 1), (kw - 1, kw - 1)],
            lhs_dilation=stride,
            dimension_numbers=("NCHW", "OIHW", "NCHW"), precision=prec)
        return y + b.reshape(1, -1, 1, 1)

    def in_prelu(h, gamma, beta, alpha):
        mean = h.mean(axis=(2, 3), keepdims=True)
        var = ((h - mean) ** 2).mean(axis=(2, 3), keepdims=True)
        y = (h - mean) / jnp.sqrt(var + EPS)
        y = y * gamma.reshape(1, -1, 1, 1) + beta.reshape(1, -1, 1, 1)
        return jnp.where(y >= 0.0, y, alpha.reshape(1, -1, 1, 1) * y)

    xp = jnp.pad(x, ((0, 0), (0, 0), (K1[0] - 1, 0), (0, 0)))
    y = conv2d(xp, p["in_w"], p["in_b"], (1, 2))
    outp, gate = jnp.split(y, 2, axis=1)
    resi = in_prelu(outp * jax.nn.sigmoid(gate),
                    p["in_gamma"], p["in_beta"], p["in_alpha"])
    h = resi
    skips = []
    for i in range(SCALE):
        h = in_prelu(conv2d(h, p[f"enco{i}_w"], p[f"enco{i}_b"], (1, 2)),
                     p[f"enco{i}_gamma"], p[f"enco{i}_beta"], p[f"enco{i}_alpha"])
        skips.append(h)
    for i in range(SCALE):
        inp = h if i == 0 else jnp.concatenate([h, skips[-(i + 1)]], axis=1)
        h = in_prelu(conv_t2d(inp, p[f"deco{i}_w"], p[f"deco{i}_b"], (1, 2)),
                     p[f"deco{i}_gamma"], p[f"deco{i}_beta"], p[f"deco{i}_alpha"])
    return resi + h


# ----------------------------------- main -------------------------------------

if __name__ == "__main__":
    key = jax.random.PRNGKey(0)
    k_x, k_p = jax.random.split(key)
    # Input: (batch=2, cin=2, time=8, freq=32) -- NCHW like PyTorch.
    x = jax.random.normal(k_x, (B, CIN, T, F0), jnp.float32)
    params = init_params(k_p)

    out = jax.block_until_ready(en_unet_forward(x, params))
    assert out.shape == (B, COUT, T, F1), out.shape
    assert bool(jnp.all(jnp.isfinite(out)))

    ref = _ref_forward(x, params)
    err = jnp.abs(out - ref)
    max_err = float(jnp.max(err))
    scale = float(jnp.max(jnp.abs(ref)))
    rel_rms = float(jnp.sqrt(jnp.mean(err ** 2) / (jnp.mean(ref ** 2) + 1e-12)))
    # Kernel runs single-pass (bf16-class) MXU matmuls; bounds are scale-aware and
    # ~50-100x tighter than any structural/indexing error would produce.
    assert rel_rms < 1.5e-2 and max_err < 2.5e-2 * max(scale, 1.0), (max_err, rel_rms)

    print("KERNEL_OK")
</pallas_src>

<mosaic_0001>
module attributes {stable_mosaic.version = 11 : i64} {
  func.func @_en_unet_kernel(%arg0: i32, %arg1: memref<32x32xf32, #tpu.memory_space<vmem>>, %arg2: memref<32x768xf32, #tpu.memory_space<vmem>>, %arg3: memref<640x384xf32, #tpu.memory_space<vmem>>, %arg4: memref<168x32xf32, #tpu.memory_space<vmem>>, %arg5: memref<152x256xf32, #tpu.memory_space<vmem>>, %arg6: memref<15x128xf32, #tpu.memory_space<vmem>>) attributes {dimension_semantics = [#tpu.dimension_semantics<arbitrary>], iteration_bounds = array<i64: 1>, scalar_prefetch = 0 : i64, scratch_operands = 0 : i64, tpu.core_type = #tpu.core_type<tc>, window_params = [{pipeline_mode = #tpu.pipeline_mode<synchronous>, transform_indices = @transform_0, window_bounds = array<i64: 32, 32>}, {pipeline_mode = #tpu.pipeline_mode<synchronous>, transform_indices = @transform_1, window_bounds = array<i64: 32, 768>}, {pipeline_mode = #tpu.pipeline_mode<synchronous>, transform_indices = @transform_2, window_bounds = array<i64: 640, 384>}, {pipeline_mode = #tpu.pipeline_mode<synchronous>, transform_indices = @transform_3, window_bounds = array<i64: 168, 32>}, {pipeline_mode = #tpu.pipeline_mode<synchronous>, transform_indices = @transform_4, window_bounds = array<i64: 152, 256>}, {pipeline_mode = #tpu.pipeline_mode<synchronous>, transform_indices = @transform_5, window_bounds = array<i64: 15, 128>}]} {
    %c24 = arith.constant 24 : index
    %c0 = arith.constant 0 : index
    %0 = vector.load %arg5[%c24, %c0] : memref<152x256xf32, #tpu.memory_space<vmem>>, vector<128x128xf32>
    %c0_0 = arith.constant 0 : index
    %c0_1 = arith.constant 0 : index
    %1 = vector.load %arg1[%c0_0, %c0_1] : memref<32x32xf32, #tpu.memory_space<vmem>>, vector<32x32xf32>
    %c0_2 = arith.constant 0 : index
    %c0_3 = arith.constant 0 : index
    %2 = vector.load %arg2[%c0_2, %c0_3] : memref<32x768xf32, #tpu.memory_space<vmem>>, vector<32x768xf32>
    %cst = arith.constant dense<0.000000e+00> : vector<32x768xf32>
    %3 = tpu.matmul %1, %2, %cst {dimension_numbers = #tpu.dot_dimension_numbers<[1], [0], [0], [1], [0, 0, 1, 1], [], []>} : vector<32x32xf32>, vector<32x768xf32>, vector<32x768xf32> -> vector<32x768xf32>
    %c0_4 = arith.constant 0 : index
    %c0_5 = arith.constant 0 : index
    %4 = vector.load %arg4[%c0_4, %c0_5] : memref<168x32xf32, #tpu.memory_space<vmem>>, vector<15x32xf32>
    %5 = vector.extract_strided_slice %3 {offsets = [0, 0], sizes = [32, 256], strides = [1, 1]} : vector<32x768xf32> to vector<32x256xf32>
    %cst_6 = arith.constant dense<0.000000e+00> : vector<15x256xf32>
    %6 = tpu.matmul %4, %5, %cst_6 {dimension_numbers = #tpu.dot_dimension_numbers<[1], [0], [0], [1], [0, 0, 1, 1], [], []>} : vector<15x32xf32>, vector<32x256xf32>, vector<15x256xf32> -> vector<15x256xf32>
    %c16 = arith.constant 16 : index
    %c0_7 = arith.constant 0 : index
    %7 = vector.load %arg4[%c16, %c0_7] : memref<168x32xf32, #tpu.memory_space<vmem>>, vector<15x32xf32>
    %8 = vector.extract_strided_slice %3 {offsets = [0, 256], sizes = [32, 256], strides = [1, 1]} : vector<32x768xf32> to vector<32x256xf32>
    %cst_8 = arith.constant dense<0.000000e+00> : vector<15x256xf32>
    %9 = tpu.matmul %7, %8, %cst_8 {dimension_numbers = #tpu.dot_dimension_numbers<[1], [0], [0], [1], [0, 0, 1, 1], [], []>} : vector<15x32xf32>, vector<32x256xf32>, vector<15x256xf32> -> vector<15x256xf32>
    %10 = arith.addf %6, %9 : vector<15x256xf32>
    %c32 = arith.constant 32 : index
    %c0_9 = arith.constant 0 : index
    %11 = vector.load %arg4[%c32, %c0_9] : memref<168x32xf32, #tpu.memory_space<vmem>>, vector<15x32xf32>
    %12 = vector.extract_strided_slice %3 {offsets = [0, 512], sizes = [32, 256], strides = [1, 1]} : vector<32x768xf32> to vector<32x256xf32>
    %cst_10 = arith.constant dense<0.000000e+00> : vector<15x256xf32>
    %13 = tpu.matmul %11, %12, %cst_10 {dimension_numbers = #tpu.dot_dimension_numbers<[1], [0], [0], [1], [0, 0, 1, 1], [], []>} : vector<15x32xf32>, vector<32x256xf32>, vector<15x256xf32> -> vector<15x256xf32>
    %14 = arith.addf %10, %13 : vector<15x256xf32>
    %c0_11 = arith.constant 0 : index
    %c0_12 = arith.constant 0 : index
    %15 = vector.load %arg5[%c0_11, %c0_12] : memref<152x256xf32, #tpu.memory_space<vmem>>, vector<1x256xf32>
    %16 = vector.broadcast %15 : vector<1x256xf32> to vector<15x256xf32>
    %17 = arith.addf %14, %16 : vector<15x256xf32>
    %18 = vector.extract_strided_slice %17 {offsets = [0, 128], sizes = [15, 128], strides = [1, 1]} : vector<15x256xf32> to vector<15x128xf32>
    %cst_13 = arith.constant 0.000000e+00 : f32
    %19 = vector.broadcast %cst_13 : f32 to vector<15x128xf32>
    %20 = arith.subf %19, %18 : vector<15x128xf32>
    %21 = math.exp %20 : vector<15x128xf32>
    %cst_14 = arith.constant 1.000000e+00 : f32
    %22 = vector.broadcast %cst_14 : f32 to vector<15x128xf32>
    %23 = arith.addf %22, %21 : vector<15x128xf32>
    %24 = tpu.reciprocal %23 {approx = true} : vector<15x128xf32> -> vector<15x128xf32>
    %25 = vector.extract_strided_slice %17 {offsets = [0, 0], sizes = [15, 128], strides = [1, 1]} : vector<15x256xf32> to vector<15x128xf32>
    %26 = arith.mulf %25, %24 : vector<15x128xf32>
    %c2 = arith.constant 2 : index
    %c0_15 = arith.constant 0 : index
    %27 = vector.load %arg5[%c2, %c0_15] : memref<152x256xf32, #tpu.memory_space<vmem>>, vector<1x128xf32>
    %c3 = arith.constant 3 : index
    %c0_16 = arith.constant 0 : index
    %28 = vector.load %arg5[%c3, %c0_16] : memref<152x256xf32, #tpu.memory_space<vmem>>, vector<1x128xf32>
    %c4 = arith.constant 4 : index
    %c0_17 = arith.constant 0 : index
    %29 = vector.load %arg5[%c4, %c0_17] : memref<152x256xf32, #tpu.memory_space<vmem>>, vector<1x128xf32>
    %cst_18 = arith.constant dense<0.000000e+00> : vector<128xf32>
    %30 = vector.multi_reduction <add>, %26, %cst_18 [0] : vector<15x128xf32> to vector<128xf32>
    %31 = vector.shape_cast %30 : vector<128xf32> to vector<1x128xf32>
    %32 = arith.mulf %26, %26 : vector<15x128xf32>
    %cst_19 = arith.constant dense<0.000000e+00> : vector<128xf32>
    %33 = vector.multi_reduction <add>, %32, %cst_19 [0] : vector<15x128xf32> to vector<128xf32>
    %34 = vector.shape_cast %33 : vector<128xf32> to vector<1x128xf32>
    %35 = tpu.concatenate %31, %34 in 0 : vector<1x128xf32>, vector<1x128xf32> -> vector<2x128xf32>
    %cst_20 = arith.constant dense<0.000000e+00> : vector<2x128xf32>
    %36 = tpu.matmul %35, %0, %cst_20 {dimension_numbers = #tpu.dot_dimension_numbers<[1], [0], [0], [1], [0, 0, 1, 1], [], []>} : vector<2x128xf32>, vector<128x128xf32>, vector<2x128xf32> -> vector<2x128xf32>
    %cst_21 = arith.constant 0.00833333377 : f32
    %37 = vector.broadcast %cst_21 : f32 to vector<2x128xf32>
    %38 = arith.mulf %36, %37 : vector<2x128xf32>
    %39 = vector.extract_strided_slice %38 {offsets = [0, 0], sizes = [1, 128], strides = [1, 1]} : vector<2x128xf32> to vector<1x128xf32>
    %40 = vector.extract_strided_slice %38 {offsets = [1, 0], sizes = [1, 128], strides = [1, 1]} : vector<2x128xf32> to vector<1x128xf32>
    %41 = arith.mulf %39, %39 : vector<1x128xf32>
    %42 = arith.subf %40, %41 : vector<1x128xf32>
    %43 = vector.broadcast %39 : vector<1x128xf32> to vector<15x128xf32>
    %44 = arith.subf %26, %43 : vector<15x128xf32>
    %cst_22 = arith.constant 9.99999974E-6 : f32
    %45 = vector.broadcast %cst_22 : f32 to vector<1x128xf32>
    %46 = arith.addf %42, %45 : vector<1x128xf32>
    %47 = math.rsqrt %46 : vector<1x128xf32>
    %48 = vector.broadcast %47 : vector<1x128xf32> to vector<15x128xf32>
    %49 = arith.mulf %44, %48 : vector<15x128xf32>
    %50 = vector.broadcast %27 : vector<1x128xf32> to vector<15x128xf32>
    %51 = arith.mulf %49, %50 : vector<15x128xf32>
    %52 = vector.broadcast %28 : vector<1x128xf32> to vector<15x128xf32>
    %53 = arith.addf %51, %52 : vector<15x128xf32>
    %cst_23 = arith.constant 0.000000e+00 : f32
    %54 = vector.broadcast %cst_23 : f32 to vector<15x128xf32>
    %55 = arith.cmpf oge, %53, %54 : vector<15x128xf32>
    %56 = vector.broadcast %29 : vector<1x128xf32> to vector<15x128xf32>
    %57 = arith.mulf %56, %53 : vector<15x128xf32>
    %58 = arith.select %55, %53, %57 : vector<15x128xi1>, vector<15x128xf32>
    %c0_24 = arith.constant 0 : index
    %c0_25 = arith.constant 0 : index
    %59 = vector.load %arg3[%c0_24, %c0_25] : memref<640x384xf32, #tpu.memory_space<vmem>>, vector<128x384xf32>
    %cst_26 = arith.constant dense<0.000000e+00> : vector<15x384xf32>
    %60 = tpu.matmul %58, %59, %cst_26 {dimension_numbers = #tpu.dot_dimension_numbers<[1], [0], [0], [1], [0, 0, 1, 1], [], []>} : vector<15x128xf32>, vector<128x384xf32>, vector<15x384xf32> -> vector<15x384xf32>
    %c48 = arith.constant 48 : index
    %c0_27 = arith.constant 0 : index
    %61 = vector.load %arg4[%c48, %c0_27] : memref<168x32xf32, #tpu.memory_space<vmem>>, vector<7x15xf32>
    %62 = vector.extract_strided_slice %60 {offsets = [0, 0], sizes = [15, 128], strides = [1, 1]} : vector<15x384xf32> to vector<15x128xf32>
    %cst_28 = arith.constant dense<0.000000e+00> : vector<7x128xf32>
    %63 = tpu.matmul %61, %62, %cst_28 {dimension_numbers = #tpu.dot_dimension_numbers<[1], [0], [0], [1], [0, 0, 1, 1], [], []>} : vector<7x15xf32>, vector<15x128xf32>, vector<7x128xf32> -> vector<7x128xf32>
    %c56 = arith.constant 56 : index
    %c0_29 = arith.constant 0 : index
    %64 = vector.load %arg4[%c56, %c0_29] : memref<168x32xf32, #tpu.memory_space<vmem>>, vector<7x15xf32>
    %65 = vector.extract_strided_slice %60 {offsets = [0, 128], sizes = [15, 128], strides = [1, 1]} : vector<15x384xf32> to vector<15x128xf32>
    %cst_30 = arith.constant dense<0.000000e+00> : vector<7x128xf32>
    %66 = tpu.matmul %64, %65, %cst_30 {dimension_numbers = #tpu.dot_dimension_numbers<[1], [0], [0], [1], [0, 0, 1, 1], [], []>} : vector<7x15xf32>, vector<15x128xf32>, vector<7x128xf32> -> vector<7x128xf32>
    %67 = arith.addf %63, %66 : vector<7x128xf32>
    %c64 = arith.constant 64 : index
    %c0_31 = arith.constant 0 : index
    %68 = vector.load %arg4[%c64, %c0_31] : memref<168x32xf32, #tpu.memory_space<vmem>>, vector<7x15xf32>
    %69 = vector.extract_strided_slice %60 {offsets = [0, 256], sizes = [15, 128], strides = [1, 1]} : vector<15x384xf32> to vector<15x128xf32>
    %cst_32 = arith.constant dense<0.000000e+00> : vector<7x128xf32>
    %70 = tpu.matmul %68, %69, %cst_32 {dimension_numbers = #tpu.dot_dimension_numbers<[1], [0], [0], [1], [0, 0, 1, 1], [], []>} : vector<7x15xf32>, vector<15x128xf32>, vector<7x128xf32> -> vector<7x128xf32>
    %71 = arith.addf %67, %70 : vector<7x128xf32>
    %c5 = arith.constant 5 : index
    %c0_33 = arith.constant 0 : index
    %72 = vector.load %arg5[%c5, %c0_33] : memref<152x256xf32, #tpu.memory_space<vmem>>, vector<1x128xf32>
    %73 = vector.broadcast %72 : vector<1x128xf32> to vector<7x128xf32>
    %74 = arith.addf %71, %73 : vector<7x128xf32>
    %c6 = arith.constant 6 : index
    %c0_34 = arith.constant 0 : index
    %75 = vector.load %arg5[%c6, %c0_34] : memref<152x256xf32, #tpu.memory_space<vmem>>, vector<1x128xf32>
    %c7 = arith.constant 7 : index
    %c0_35 = arith.constant 0 : index
    %76 = vector.load %arg5[%c7, %c0_35] : memref<152x256xf32, #tpu.memory_space<vmem>>, vector<1x128xf32>
    %c8 = arith.constant 8 : index
    %c0_36 = arith.constant 0 : index
    %77 = vector.load %arg5[%c8, %c0_36] : memref<152x256xf32, #tpu.memory_space<vmem>>, vector<1x128xf32>
    %cst_37 = arith.constant dense<0.000000e+00> : vector<128xf32>
    %78 = vector.multi_reduction <add>, %74, %cst_37 [0] : vector<7x128xf32> to vector<128xf32>
    %79 = vector.shape_cast %78 : vector<128xf32> to vector<1x128xf32>
    %80 = arith.mulf %74, %74 : vector<7x128xf32>
    %cst_38 = arith.constant dense<0.000000e+00> : vector<128xf32>
    %81 = vector.multi_reduction <add>, %80, %cst_38 [0] : vector<7x128xf32> to vector<128xf32>
    %82 = vector.shape_cast %81 : vector<128xf32> to vector<1x128xf32>
    %83 = tpu.concatenate %79, %82 in 0 : vector<1x128xf32>, vector<1x128xf32> -> vector<2x128xf32>
    %cst_39 = arith.constant dense<0.000000e+00> : vector<2x128xf32>
    %84 = tpu.matmul %83, %0, %cst_39 {dimension_numbers = #tpu.dot_dimension_numbers<[1], [0], [0], [1], [0, 0, 1, 1], [], []>} : vector<2x128xf32>, vector<128x128xf32>, vector<2x128xf32> -> vector<2x128xf32>
    %cst_40 = arith.constant 0.0178571437 : f32
    %85 = vector.broadcast %cst_40 : f32 to vector<2x128xf32>
    %86 = arith.mulf %84, %85 : vector<2x128xf32>
    %87 = vector.extract_strided_slice %86 {offsets = [0, 0], sizes = [1, 128], strides = [1, 1]} : vector<2x128xf32> to vector<1x128xf32>
    %88 = vector.extract_strided_slice %86 {offsets = [1, 0], sizes = [1, 128], strides = [1, 1]} : vector<2x128xf32> to vector<1x128xf32>
    %89 = arith.mulf %87, %87 : vector<1x128xf32>
    %90 = arith.subf %88, %89 : vector<1x128xf32>
    %91 = vector.broadcast %87 : vector<1x128xf32> to vector<7x128xf32>
    %92 = arith.subf %74, %91 : vector<7x128xf32>
    %cst_41 = arith.constant 9.99999974E-6 : f32
    %93 = vector.broadcast %cst_41 : f32 to vector<1x128xf32>
    %94 = arith.addf %90, %93 : vector<1x128xf32>
    %95 = math.rsqrt %94 : vector<1x128xf32>
    %96 = vector.broadcast %95 : vector<1x128xf32> to vector<7x128xf32>
    %97 = arith.mulf %92, %96 : vector<7x128xf32>
    %98 = vector.broadcast %75 : vector<1x128xf32> to vector<7x128xf32>
    %99 = arith.mulf %97, %98 : vector<7x128xf32>
    %100 = vector.broadcast %76 : vector<1x128xf32> to vector<7x128xf32>
    %101 = arith.addf %99, %100 : vector<7x128xf32>
    %cst_42 = arith.constant 0.000000e+00 : f32
    %102 = vector.broadcast %cst_42 : f32 to vector<7x128xf32>
    %103 = arith.cmpf oge, %101, %102 : vector<7x128xf32>
    %104 = vector.broadcast %77 : vector<1x128xf32> to vector<7x128xf32>
    %105 = arith.mulf %104, %101 : vector<7x128xf32>
    %106 = arith.select %103, %101, %105 : vector<7x128xi1>, vector<7x128xf32>
    %c128 = arith.constant 128 : index
    %c0_43 = arith.constant 0 : index
    %107 = vector.load %arg3[%c128, %c0_43] : memref<640x384xf32, #tpu.memory_space<vmem>>, vector<128x384xf32>
    %cst_44 = arith.constant dense<0.000000e+00> : vector<7x384xf32>
    %108 = tpu.matmul %106, %107, %cst_44 {dimension_numbers = #tpu.dot_dimension_numbers<[1], [0], [0], [1], [0, 0, 1, 1], [], []>} : vector<7x128xf32>, vector<128x384xf32>, vector<7x384xf32> -> vector<7x384xf32>
    %c72 = arith.constant 72 : index
    %c0_45 = arith.constant 0 : index
    %109 = vector.load %arg4[%c72, %c0_45] : memref<168x32xf32, #tpu.memory_space<vmem>>, vector<3x7xf32>
    %110 = vector.extract_strided_slice %108 {offsets = [0, 0], sizes = [7, 128], strides = [1, 1]} : vector<7x384xf32> to vector<7x128xf32>
    %cst_46 = arith.constant dense<0.000000e+00> : vector<3x128xf32>
    %111 = tpu.matmul %109, %110, %cst_46 {dimension_numbers = #tpu.dot_dimension_numbers<[1], [0], [0], [1], [0, 0, 1, 1], [], []>} : vector<3x7xf32>, vector<7x128xf32>, vector<3x128xf32> -> vector<3x128xf32>
    %c80 = arith.constant 80 : index
    %c0_47 = arith.constant 0 : index
    %112 = vector.load %arg4[%c80, %c0_47] : memref<168x32xf32, #tpu.memory_space<vmem>>, vector<3x7xf32>
    %113 = vector.extract_strided_slice %108 {offsets = [0, 128], sizes = [7, 128], strides = [1, 1]} : vector<7x384xf32> to vector<7x128xf32>
    %cst_48 = arith.constant dense<0.000000e+00> : vector<3x128xf32>
    %114 = tpu.matmul %112, %113, %cst_48 {dimension_numbers = #tpu.dot_dimension_numbers<[1], [0], [0], [1], [0, 0, 1, 1], [], []>} : vector<3x7xf32>, vector<7x128xf32>, vector<3x128xf32> -> vector<3x128xf32>
    %115 = arith.addf %111, %114 : vector<3x128xf32>
    %c88 = arith.constant 88 : index
    %c0_49 = arith.constant 0 : index
    %116 = vector.load %arg4[%c88, %c0_49] : memref<168x32xf32, #tpu.memory_space<vmem>>, vector<3x7xf32>
    %117 = vector.extract_strided_slice %108 {offsets = [0, 256], sizes = [7, 128], strides = [1, 1]} : vector<7x384xf32> to vector<7x128xf32>
    %cst_50 = arith.constant dense<0.000000e+00> : vector<3x128xf32>
    %118 = tpu.matmul %116, %117, %cst_50 {dimension_numbers = #tpu.dot_dimension_numbers<[1], [0], [0], [1], [0, 0, 1, 1], [], []>} : vector<3x7xf32>, vector<7x128xf32>, vector<3x128xf32> -> vector<3x128xf32>
    %119 = arith.addf %115, %118 : vector<3x128xf32>
    %c9 = arith.constant 9 : index
    %c0_51 = arith.constant 0 : index
    %120 = vector.load %arg5[%c9, %c0_51] : memref<152x256xf32, #tpu.memory_space<vmem>>, vector<1x128xf32>
    %121 = vector.broadcast %120 : vector<1x128xf32> to vector<3x128xf32>
    %122 = arith.addf %119, %121 : vector<3x128xf32>
    %c10 = arith.constant 10 : index
    %c0_52 = arith.constant 0 : index
    %123 = vector.load %arg5[%c10, %c0_52] : memref<152x256xf32, #tpu.memory_space<vmem>>, vector<1x128xf32>
    %c11 = arith.constant 11 : index
    %c0_53 = arith.constant 0 : index
    %124 = vector.load %arg5[%c11, %c0_53] : memref<152x256xf32, #tpu.memory_space<vmem>>, vector<1x128xf32>
    %c12 = arith.constant 12 : index
    %c0_54 = arith.constant 0 : index
    %125 = vector.load %arg5[%c12, %c0_54] : memref<152x256xf32, #tpu.memory_space<vmem>>, vector<1x128xf32>
    %cst_55 = arith.constant dense<0.000000e+00> : vector<128xf32>
    %126 = vector.multi_reduction <add>, %122, %cst_55 [0] : vector<3x128xf32> to vector<128xf32>
    %127 = vector.shape_cast %126 : vector<128xf32> to vector<1x128xf32>
    %128 = arith.mulf %122, %122 : vector<3x128xf32>
    %cst_56 = arith.constant dense<0.000000e+00> : vector<128xf32>
    %129 = vector.multi_reduction <add>, %128, %cst_56 [0] : vector<3x128xf32> to vector<128xf32>
    %130 = vector.shape_cast %129 : vector<128xf32> to vector<1x128xf32>
    %131 = tpu.concatenate %127, %130 in 0 : vector<1x128xf32>, vector<1x128xf32> -> vector<2x128xf32>
    %cst_57 = arith.constant dense<0.000000e+00> : vector<2x128xf32>
    %132 = tpu.matmul %131, %0, %cst_57 {dimension_numbers = #tpu.dot_dimension_numbers<[1], [0], [0], [1], [0, 0, 1, 1], [], []>} : vector<2x128xf32>, vector<128x128xf32>, vector<2x128xf32> -> vector<2x128xf32>
    %cst_58 = arith.constant 0.0416666679 : f32
    %133 = vector.broadcast %cst_58 : f32 to vector<2x128xf32>
    %134 = arith.mulf %132, %133 : vector<2x128xf32>
    %135 = vector.extract_strided_slice %134 {offsets = [0, 0], sizes = [1, 128], strides = [1, 1]} : vector<2x128xf32> to vector<1x128xf32>
    %136 = vector.extract_strided_slice %134 {offsets = [1, 0], sizes = [1, 128], strides = [1, 1]} : vector<2x128xf32> to vector<1x128xf32>
    %137 = arith.mulf %135, %135 : vector<1x128xf32>
    %138 = arith.subf %136, %137 : vector<1x128xf32>
    %139 = vector.broadcast %135 : vector<1x128xf32> to vector<3x128xf32>
    %140 = arith.subf %122, %139 : vector<3x128xf32>
    %cst_59 = arith.constant 9.99999974E-6 : f32
    %141 = vector.broadcast %cst_59 : f32 to vector<1x128xf32>
    %142 = arith.addf %138, %141 : vector<1x128xf32>
    %143 = math.rsqrt %142 : vector<1x128xf32>
    %144 = vector.broadcast %143 : vector<1x128xf32> to vector<3x128xf32>
    %145 = arith.mulf %140, %144 : vector<3x128xf32>
    %146 = vector.broadcast %123 : vector<1x128xf32> to vector<3x128xf32>
    %147 = arith.mulf %145, %146 : vector<3x128xf32>
    %148 = vector.broadcast %124 : vector<1x128xf32> to vector<3x128xf32>
    %149 = arith.addf %147, %148 : vector<3x128xf32>
    %cst_60 = arith.constant 0.000000e+00 : f32
    %150 = vector.broadcast %cst_60 : f32 to vector<3x128xf32>
    %151 = arith.cmpf oge, %149, %150 : vector<3x128xf32>
    %152 = vector.broadcast %125 : vector<1x128xf32> to vector<3x128xf32>
    %153 = arith.mulf %152, %149 : vector<3x128xf32>
    %154 = arith.select %151, %149, %153 : vector<3x128xi1>, vector<3x128xf32>
    %c256 = arith.constant 256 : index
    %c0_61 = arith.constant 0 : index
    %155 = vector.load %arg3[%c256, %c0_61] : memref<640x384xf32, #tpu.memory_space<vmem>>, vector<128x384xf32>
    %cst_62 = arith.constant dense<0.000000e+00> : vector<3x384xf32>
    %156 = tpu.matmul %154, %155, %cst_62 {dimension_numbers = #tpu.dot_dimension_numbers<[1], [0], [0], [1], [0, 0, 1, 1], [], []>} : vector<3x128xf32>, vector<128x384xf32>, vector<3x384xf32> -> vector<3x384xf32>
    %c96 = arith.constant 96 : index
    %c0_63 = arith.constant 0 : index
    %157 = vector.load %arg4[%c96, %c0_63] : memref<168x32xf32, #tpu.memory_space<vmem>>, vector<7x3xf32>
    %158 = vector.extract_strided_slice %156 {offsets = [0, 0], sizes = [3, 128], strides = [1, 1]} : vector<3x384xf32> to vector<3x128xf32>
    %cst_64 = arith.constant dense<0.000000e+00> : vector<7x128xf32>
    %159 = tpu.matmul %157, %158, %cst_64 {dimension_numbers = #tpu.dot_dimension_numbers<[1], [0], [0], [1], [0, 0, 1, 1], [], []>} : vector<7x3xf32>, vector<3x128xf32>, vector<7x128xf32> -> vector<7x128xf32>
    %c104 = arith.constant 104 : index
    %c0_65 = arith.constant 0 : index
    %160 = vector.load %arg4[%c104, %c0_65] : memref<168x32xf32, #tpu.memory_space<vmem>>, vector<7x3xf32>
    %161 = vector.extract_strided_slice %156 {offsets = [0, 128], sizes = [3, 128], strides = [1, 1]} : vector<3x384xf32> to vector<3x128xf32>
    %cst_66 = arith.constant dense<0.000000e+00> : vector<7x128xf32>
    %162 = tpu.matmul %160, %161, %cst_66 {dimension_numbers = #tpu.dot_dimension_numbers<[1], [0], [0], [1], [0, 0, 1, 1], [], []>} : vector<7x3xf32>, vector<3x128xf32>, vector<7x128xf32> -> vector<7x128xf32>
    %163 = arith.addf %159, %162 : vector<7x128xf32>
    %c112 = arith.constant 112 : index
    %c0_67 = arith.constant 0 : index
    %164 = vector.load %arg4[%c112, %c0_67] : memref<168x32xf32, #tpu.memory_space<vmem>>, vector<7x3xf32>
    %165 = vector.extract_strided_slice %156 {offsets = [0, 256], sizes = [3, 128], strides = [1, 1]} : vector<3x384xf32> to vector<3x128xf32>
    %cst_68 = arith.constant dense<0.000000e+00> : vector<7x128xf32>
    %166 = tpu.matmul %164, %165, %cst_68 {dimension_numbers = #tpu.dot_dimension_numbers<[1], [0], [0], [1], [0, 0, 1, 1], [], []>} : vector<7x3xf32>, vector<3x128xf32>, vector<7x128xf32> -> vector<7x128xf32>
    %167 = arith.addf %163, %166 : vector<7x128xf32>
    %c13 = arith.constant 13 : index
    %c0_69 = arith.constant 0 : index
    %168 = vector.load %arg5[%c13, %c0_69] : memref<152x256xf32, #tpu.memory_space<vmem>>, vector<1x128xf32>
    %169 = vector.broadcast %168 : vector<1x128xf32> to vector<7x128xf32>
    %170 = arith.addf %167, %169 : vector<7x128xf32>
    %c14 = arith.constant 14 : index
    %c0_70 = arith.constant 0 : index
    %171 = vector.load %arg5[%c14, %c0_70] : memref<152x256xf32, #tpu.memory_space<vmem>>, vector<1x128xf32>
    %c15 = arith.constant 15 : index
    %c0_71 = arith.constant 0 : index
    %172 = vector.load %arg5[%c15, %c0_71] : memref<152x256xf32, #tpu.memory_space<vmem>>, vector<1x128xf32>
    %c16_72 = arith.constant 16 : index
    %c0_73 = arith.constant 0 : index
    %173 = vector.load %arg5[%c16_72, %c0_73] : memref<152x256xf32, #tpu.memory_space<vmem>>, vector<1x128xf32>
    %cst_74 = arith.constant dense<0.000000e+00> : vector<128xf32>
    %174 = vector.multi_reduction <add>, %170, %cst_74 [0] : vector<7x128xf32> to vector<128xf32>
    %175 = vector.shape_cast %174 : vector<128xf32> to vector<1x128xf32>
    %176 = arith.mulf %170, %170 : vector<7x128xf32>
    %cst_75 = arith.constant dense<0.000000e+00> : vector<128xf32>
    %177 = vector.multi_reduction <add>, %176, %cst_75 [0] : vector<7x128xf32> to vector<128xf32>
    %178 = vector.shape_cast %177 : vector<128xf32> to vector<1x128xf32>
    %179 = tpu.concatenate %175, %178 in 0 : vector<1x128xf32>, vector<1x128xf32> -> vector<2x128xf32>
    %cst_76 = arith.constant dense<0.000000e+00> : vector<2x128xf32>
    %180 = tpu.matmul %179, %0, %cst_76 {dimension_numbers = #tpu.dot_dimension_numbers<[1], [0], [0], [1], [0, 0, 1, 1], [], []>} : vector<2x128xf32>, vector<128x128xf32>, vector<2x128xf32> -> vector<2x128xf32>
    %cst_77 = arith.constant 0.0178571437 : f32
    %181 = vector.broadcast %cst_77 : f32 to vector<2x128xf32>
    %182 = arith.mulf %180, %181 : vector<2x128xf32>
    %183 = vector.extract_strided_slice %182 {offsets = [0, 0], sizes = [1, 128], strides = [1, 1]} : vector<2x128xf32> to vector<1x128xf32>
    %184 = vector.extract_strided_slice %182 {offsets = [1, 0], sizes = [1, 128], strides = [1, 1]} : vector<2x128xf32> to vector<1x128xf32>
    %185 = arith.mulf %183, %183 : vector<1x128xf32>
    %186 = arith.subf %184, %185 : vector<1x128xf32>
    %187 = vector.broadcast %183 : vector<1x128xf32> to vector<7x128xf32>
    %188 = arith.subf %170, %187 : vector<7x128xf32>
    %cst_78 = arith.constant 9.99999974E-6 : f32
    %189 = vector.broadcast %cst_78 : f32 to vector<1x128xf32>
    %190 = arith.addf %186, %189 : vector<1x128xf32>
    %191 = math.rsqrt %190 : vector<1x128xf32>
    %192 = vector.broadcast %191 : vector<1x128xf32> to vector<7x128xf32>
    %193 = arith.mulf %188, %192 : vector<7x128xf32>
    %194 = vector.broadcast %171 : vector<1x128xf32> to vector<7x128xf32>
    %195 = arith.mulf %193, %194 : vector<7x128xf32>
    %196 = vector.broadcast %172 : vector<1x128xf32> to vector<7x128xf32>
    %197 = arith.addf %195, %196 : vector<7x128xf32>
    %cst_79 = arith.constant 0.000000e+00 : f32
    %198 = vector.broadcast %cst_79 : f32 to vector<7x128xf32>
    %199 = arith.cmpf oge, %197, %198 : vector<7x128xf32>
    %200 = vector.broadcast %173 : vector<1x128xf32> to vector<7x128xf32>
    %201 = arith.mulf %200, %197 : vector<7x128xf32>
    %202 = arith.select %199, %197, %201 : vector<7x128xi1>, vector<7x128xf32>
    %c384 = arith.constant 384 : index
    %c0_80 = arith.constant 0 : index
    %203 = vector.load %arg3[%c384, %c0_80] : memref<640x384xf32, #tpu.memory_space<vmem>>, vector<128x384xf32>
    %cst_81 = arith.constant dense<0.000000e+00> : vector<7x384xf32>
    %204 = tpu.matmul %202, %203, %cst_81 {dimension_numbers = #tpu.dot_dimension_numbers<[1], [0], [0], [1], [0, 0, 1, 1], [], []>} : vector<7x128xf32>, vector<128x384xf32>, vector<7x384xf32> -> vector<7x384xf32>
    %c512 = arith.constant 512 : index
    %c0_82 = arith.constant 0 : index
    %205 = vector.load %arg3[%c512, %c0_82] : memref<640x384xf32, #tpu.memory_space<vmem>>, vector<128x384xf32>
    %cst_83 = arith.constant dense<0.000000e+00> : vector<7x384xf32>
    %206 = tpu.matmul %106, %205, %cst_83 {dimension_numbers = #tpu.dot_dimension_numbers<[1], [0], [0], [1], [0, 0, 1, 1], [], []>} : vector<7x128xf32>, vector<128x384xf32>, vector<7x384xf32> -> vector<7x384xf32>
    %207 = arith.addf %204, %206 : vector<7x384xf32>
    %c120 = arith.constant 120 : index
    %c0_84 = arith.constant 0 : index
    %208 = vector.load %arg4[%c120, %c0_84] : memref<168x32xf32, #tpu.memory_space<vmem>>, vector<15x7xf32>
    %209 = vector.extract_strided_slice %207 {offsets = [0, 0], sizes = [7, 128], strides = [1, 1]} : vector<7x384xf32> to vector<7x128xf32>
    %cst_85 = arith.constant dense<0.000000e+00> : vector<15x128xf32>
    %210 = tpu.matmul %208, %209, %cst_85 {dimension_numbers = #tpu.dot_dimension_numbers<[1], [0], [0], [1], [0, 0, 1, 1], [], []>} : vector<15x7xf32>, vector<7x128xf32>, vector<15x128xf32> -> vector<15x128xf32>
    %c136 = arith.constant 136 : index
    %c0_86 = arith.constant 0 : index
    %211 = vector.load %arg4[%c136, %c0_86] : memref<168x32xf32, #tpu.memory_space<vmem>>, vector<15x7xf32>
    %212 = vector.extract_strided_slice %207 {offsets = [0, 128], sizes = [7, 128], strides = [1, 1]} : vector<7x384xf32> to vector<7x128xf32>
    %cst_87 = arith.constant dense<0.000000e+00> : vector<15x128xf32>
    %213 = tpu.matmul %211, %212, %cst_87 {dimension_numbers = #tpu.dot_dimension_numbers<[1], [0], [0], [1], [0, 0, 1, 1], [], []>} : vector<15x7xf32>, vector<7x128xf32>, vector<15x128xf32> -> vector<15x128xf32>
    %214 = arith.addf %210, %213 : vector<15x128xf32>
    %c152 = arith.constant 152 : index
    %c0_88 = arith.constant 0 : index
    %215 = vector.load %arg4[%c152, %c0_88] : memref<168x32xf32, #tpu.memory_space<vmem>>, vector<15x7xf32>
    %216 = vector.extract_strided_slice %207 {offsets = [0, 256], sizes = [7, 128], strides = [1, 1]} : vector<7x384xf32> to vector<7x128xf32>
    %cst_89 = arith.constant dense<0.000000e+00> : vector<15x128xf32>
    %217 = tpu.matmul %215, %216, %cst_89 {dimension_numbers = #tpu.dot_dimension_numbers<[1], [0], [0], [1], [0, 0, 1, 1], [], []>} : vector<15x7xf32>, vector<7x128xf32>, vector<15x128xf32> -> vector<15x128xf32>
    %218 = arith.addf %214, %217 : vector<15x128xf32>
    %c17 = arith.constant 17 : index
    %c0_90 = arith.constant 0 : index
    %219 = vector.load %arg5[%c17, %c0_90] : memref<152x256xf32, #tpu.memory_space<vmem>>, vector<1x128xf32>
    %220 = vector.broadcast %219 : vector<1x128xf32> to vector<15x128xf32>
    %221 = arith.addf %218, %220 : vector<15x128xf32>
    %c18 = arith.constant 18 : index
    %c0_91 = arith.constant 0 : index
    %222 = vector.load %arg5[%c18, %c0_91] : memref<152x256xf32, #tpu.memory_space<vmem>>, vector<1x128xf32>
    %c19 = arith.constant 19 : index
    %c0_92 = arith.constant 0 : index
    %223 = vector.load %arg5[%c19, %c0_92] : memref<152x256xf32, #tpu.memory_space<vmem>>, vector<1x128xf32>
    %c20 = arith.constant 20 : index
    %c0_93 = arith.constant 0 : index
    %224 = vector.load %arg5[%c20, %c0_93] : memref<152x256xf32, #tpu.memory_space<vmem>>, vector<1x128xf32>
    %cst_94 = arith.constant dense<0.000000e+00> : vector<128xf32>
    %225 = vector.multi_reduction <add>, %221, %cst_94 [0] : vector<15x128xf32> to vector<128xf32>
    %226 = vector.shape_cast %225 : vector<128xf32> to vector<1x128xf32>
    %227 = arith.mulf %221, %221 : vector<15x128xf32>
    %cst_95 = arith.constant dense<0.000000e+00> : vector<128xf32>
    %228 = vector.multi_reduction <add>, %227, %cst_95 [0] : vector<15x128xf32> to vector<128xf32>
    %229 = vector.shape_cast %228 : vector<128xf32> to vector<1x128xf32>
    %230 = tpu.concatenate %226, %229 in 0 : vector<1x128xf32>, vector<1x128xf32> -> vector<2x128xf32>
    %cst_96 = arith.constant dense<0.000000e+00> : vector<2x128xf32>
    %231 = tpu.matmul %230, %0, %cst_96 {dimension_numbers = #tpu.dot_dimension_numbers<[1], [0], [0], [1], [0, 0, 1, 1], [], []>} : vector<2x128xf32>, vector<128x128xf32>, vector<2x128xf32> -> vector<2x128xf32>
    %cst_97 = arith.constant 0.00833333377 : f32
    %232 = vector.broadcast %cst_97 : f32 to vector<2x128xf32>
    %233 = arith.mulf %231, %232 : vector<2x128xf32>
    %234 = vector.extract_strided_slice %233 {offsets = [0, 0], sizes = [1, 128], strides = [1, 1]} : vector<2x128xf32> to vector<1x128xf32>
    %235 = vector.extract_strided_slice %233 {offsets = [1, 0], sizes = [1, 128], strides = [1, 1]} : vector<2x128xf32> to vector<1x128xf32>
    %236 = arith.mulf %234, %234 : vector<1x128xf32>
    %237 = arith.subf %235, %236 : vector<1x128xf32>
    %238 = vector.broadcast %234 : vector<1x128xf32> to vector<15x128xf32>
    %239 = arith.subf %221, %238 : vector<15x128xf32>
    %cst_98 = arith.constant 9.99999974E-6 : f32
    %240 = vector.broadcast %cst_98 : f32 to vector<1x128xf32>
    %241 = arith.addf %237, %240 : vector<1x128xf32>
    %242 = math.rsqrt %241 : vector<1x128xf32>
    %243 = vector.broadcast %242 : vector<1x128xf32> to vector<15x128xf32>
    %244 = arith.mulf %239, %243 : vector<15x128xf32>
    %245 = vector.broadcast %222 : vector<1x128xf32> to vector<15x128xf32>
    %246 = arith.mulf %244, %245 : vector<15x128xf32>
    %247 = vector.broadcast %223 : vector<1x128xf32> to vector<15x128xf32>
    %248 = arith.addf %246, %247 : vector<15x128xf32>
    %cst_99 = arith.constant 0.000000e+00 : f32
    %249 = vector.broadcast %cst_99 : f32 to vector<15x128xf32>
    %250 = arith.cmpf oge, %248, %249 : vector<15x128xf32>
    %251 = vector.broadcast %224 : vector<1x128xf32> to vector<15x128xf32>
    %252 = arith.mulf %251, %248 : vector<15x128xf32>
    %253 = arith.select %250, %248, %252 : vector<15x128xi1>, vector<15x128xf32>
    %254 = arith.addf %58, %253 : vector<15x128xf32>
    %c0_100 = arith.constant 0 : index
    %c0_101 = arith.constant 0 : index
    %255 = vector.load %arg6[%c0_100, %c0_101] : memref<15x128xf32, #tpu.memory_space<vmem>>, vector<15x128xf32>
    tpu.vector_store %arg6[%c0_100, %c0_101], %254 {strides = array<i32>} : memref<15x128xf32, #tpu.memory_space<vmem>>, vector<15x128xf32>,
    return
  }
  func.func @transform_0(%arg0: i32) -> (i32, i32) {
    %c0_i32 = arith.constant 0 : i32
    %c0_i32_0 = arith.constant 0 : i32
    %c0_i32_1 = arith.constant 0 : i32
    return %c0_i32, %c0_i32_0 : i32, i32
  }
  func.func @transform_1(%arg0: i32) -> (i32, i32) {
    %c0_i32 = arith.constant 0 : i32
    %c0_i32_0 = arith.constant 0 : i32
    %c0_i32_1 = arith.constant 0 : i32
    return %c0_i32, %c0_i32_0 : i32, i32
  }
  func.func @transform_2(%arg0: i32) -> (i32, i32) {
    %c0_i32 = arith.constant 0 : i32
    %c0_i32_0 = arith.constant 0 : i32
    %c0_i32_1 = arith.constant 0 : i32
    return %c0_i32, %c0_i32_0 : i32, i32
  }
  func.func @transform_3(%arg0: i32) -> (i32, i32) {
    %c0_i32 = arith.constant 0 : i32
    %c0_i32_0 = arith.constant 0 : i32
    %c0_i32_1 = arith.constant 0 : i32
    return %c0_i32, %c0_i32_0 : i32, i32
  }
  func.func @transform_4(%arg0: i32) -> (i32, i32) {
    %c0_i32 = arith.constant 0 : i32
    %c0_i32_0 = arith.constant 0 : i32
    %c0_i32_1 = arith.constant 0 : i32
    return %c0_i32, %c0_i32_0 : i32, i32
  }
  func.func @transform_5(%arg0: i32) -> (i32, i32) {
    %c0_i32 = arith.constant 0 : i32
    %c0_i32_0 = arith.constant 0 : i32
    %c0_i32_1 = arith.constant 0 : i32
    return %c0_i32, %c0_i32_0 : i32, i32
  }
}

</mosaic_0001>

<llo_original>
// kernel: tile.162
$region0: #{tile.162}
  #allocation0 [shape = 's32[1]{0}', space=sflag, size = 0x4, scoped, tag = 'scoped memory for tile.162']
  %s0 = inlined_call_operand.vmem [shape: f32[64], index: 0, kind: input, shape index: {}]
  %s1 = inlined_call_operand.vmem [shape: f32[2,64], index: 1, kind: output, shape index: {}]
  // Predicated region
  $region2: #{tile.162} parent=0 // pred_check
    _
  $region3: #{tile.162} parent=0 // pred_check_branch
    %3 = sbr.rel (0) target = $region5
  $region4: #{tile.162} parent=0 // pred_region
    _
  $region5: #{tile.162} parent=0 // pred_fallthru
    _
  %v4 = vld [vmem:[%s0] ss:$0 sm:$0xff]
  %5 = vst [vmem:[%s1] sm:$0x3] %v4

// kernel: tile.161
$region0: #{tile.161}
  %s0 = inlined_call_operand.vmem [shape: f32[8,8], index: 0, kind: input, shape index: {}]
  %s1 = inlined_call_operand.vmem [shape: f32[64], index: 1, kind: output, shape index: {}]
  $region1: #{tile.161} parent=0
    #allocation0 [shape = 'u8[4096]{0}', space=vmem, size = 0x1000, scoped, tag = 'scoped mem for output reshape']
    %v2 = vld [vmem:[%s0] sm:$0x1]
    %vm3 = vcmask 64512
    %4 = vst.msk [vmem:[#allocation0] sm:$0x1] %vm3, %v2
    %s5 = scalar_lea.vmem %s0, 7
    %v6 = vld [vmem:[%s5] sm:$0x1]
    %7 = vrot.lane.b32.xlu0 %v6, 56
    %v8 = vpop.permute.xlu0 %7
    %vm9 = vcmask 523712
    %10 = vst.msk [vmem:[#allocation0] sm:$0x1] %vm9, %v8
    %s11 = scalar_lea.vmem %s0, 6
    %v12 = vld [vmem:[%s11] sm:$0x1]
    %13 = vrot.lane.b32.xlu0 %v12, 48
    %v14 = vpop.permute.xlu0 %13
    %vm15 = vcmask 458112
    %16 = vst.msk [vmem:[#allocation0] sm:$0x1] %vm15, %v14
    %s17 = scalar_lea.vmem %s0, 5
    %v18 = vld [vmem:[%s17] sm:$0x1]
    %19 = vrot.lane.b32.xlu0 %v18, 40
    %v20 = vpop.permute.xlu0 %19
    %vm21 = vcmask 392512
    %22 = vst.msk [vmem:[#allocation0] sm:$0x1] %vm21, %v20
    %s23 = scalar_lea.vmem %s0, 4
    %v24 = vld [vmem:[%s23] sm:$0x1]
    %25 = vrot.lane.b32.xlu0 %v24, 32
    %v26 = vpop.permute.xlu0 %25
    %vm27 = vcmask 326912
    %28 = vst.msk [vmem:[#allocation0] sm:$0x1] %vm27, %v26
    %s29 = scalar_lea.vmem %s0, 3
    %v30 = vld [vmem:[%s29] sm:$0x1]
    %31 = vrot.lane.b32.xlu0 %v30, 24
    %v32 = vpop.permute.xlu0 %31
    %vm33 = vcmask 261312
    %34 = vst.msk [vmem:[#allocation0] sm:$0x1] %vm33, %v32
    %s35 = scalar_lea.vmem %s0, 2
    %v36 = vld [vmem:[%s35] sm:$0x1]
    %37 = vrot.lane.b32.xlu0 %v36, 16
    %v38 = vpop.permute.xlu0 %37
    %vm39 = vcmask 195712
    %40 = vst.msk [vmem:[#allocation0] sm:$0x1] %vm39, %v38
    %s41 = scalar_lea.vmem %s0, 1
    %v42 = vld [vmem:[%s41] sm:$0x1]
    %43 = vrot.lane.b32.xlu0 %v42, 8
    %v44 = vpop.permute.xlu0 %43
    %vm45 = vcmask 130112
    %46 = vst.msk [vmem:[#allocation0] sm:$0x1] %vm45, %v44
    %s48 = ssub.s32 2, 1
    %v49 = vld [vmem:[#allocation0] sm:%s48]
    %s51 = ssub.s32 2, 1
    %52 = vst [vmem:[%s1] sm:%s51] %v49

// kernel: tile.163
$region0: #{tile.163}
  %s0 = inlined_call_operand.vmem [shape: f32[2,64], index: 0, kind: input, shape index: {}]
  %s1 = inlined_call_operand.vmem [shape: f32[1,128], index: 1, kind: output, shape index: {}]
  $region1: #{tile.163} parent=0
    #allocation0 [shape = 'u8[4096]{0}', space=vmem, size = 0x1000, scoped, tag = 'scoped mem for output reshape']
    #allocation1 [shape = 'u8[4096]{0}', space=vmem, size = 0x1000, scoped, tag = 'scoped mem for input reshape']
    %s3 = ssub.s32 4, 1
    %v4 = vld [vmem:[%s0] sm:%s3]
    %5 = vst [vmem:[#allocation1] sm:%s3] %v4
    %v6 = vld [vmem:[#allocation1] sm:$0x1]
    %vm7 = vcmask 523264
    %8 = vst.msk [vmem:[#allocation0] sm:$0x1] %vm7, %v6
    %s9 = scalar_lea.vmem [#allocation1], 1
    %v10 = vld [vmem:[%s9] sm:$0x1]
    %11 = vrot.lane.b32.xlu0 %v10, 64
    %v12 = vpop.permute.xlu0 %11
    %vm13 = vcmask 1048064
    %14 = vst.msk [vmem:[#allocation0] sm:$0x1] %vm13, %v12
    %s16 = ssub.s32 2, 1
    %v17 = vld [vmem:[#allocation0] sm:%s16]
    %s19 = ssub.s32 2, 1
    %20 = vst [vmem:[%s1] sm:%s19] %v17

// kernel: en_unet_forward.1
$region0: #{en_unet_forward.1}
  #allocation0 [shape = 'u32[]', space=smem, size = 0x4, offset = 0x4, fixed_abs, tag = 'smem constant byte address 0x4 - core index']
  #allocation1 [shape = 'u32[72,128]{1,0:T(1,128)}', space=vmem, size = 0x9000, scoped, tag = 'internal scratch']
  %s0 = inlined_call_operand.vmem [shape: f32[32,32], index: 0, kind: input, shape index: {}]
  %s1 = inlined_call_operand.vmem [shape: f32[32,768], index: 1, kind: input, shape index: {}]
  %s2 = inlined_call_operand.vmem [shape: f32[640,384], index: 2, kind: input, shape index: {}]
  %s3 = inlined_call_operand.vmem [shape: f32[168,32], index: 3, kind: input, shape index: {}]
  %s4 = inlined_call_operand.vmem [shape: f32[152,256], index: 4, kind: input, shape index: {}]
  %s5 = inlined_call_operand.vmem [shape: f32[15,128], index: 5, kind: output, shape index: {}]
  %s6 = sld [smem:[#allocation0]]
  $region30: #{en_unet_forward.1} parent=0
    _
  %s8 = ssub.s32 1, %s6
  %s9 = scalar_select 0, %s8, %s6
  // Predicated region
  $region2: #{en_unet_forward.1} parent=0 // pred_check
    _
  $region3: #{en_unet_forward.1} parent=0 // pred_check_branch
    %11 = sbr.rel (0) target = $region5
  $region4: #{en_unet_forward.1} parent=0 // pred_region
    _
  $region5: #{en_unet_forward.1} parent=0 // pred_fallthru
    _
  // Predicated region
  $region6: #{en_unet_forward.1} parent=0 // pred_check
    _
  $region7: #{en_unet_forward.1} parent=0 // pred_check_branch
    %13 = sbr.rel (0) target = $region9
  $region8: #{en_unet_forward.1} parent=0 // pred_region
    _
  $region9: #{en_unet_forward.1} parent=0 // pred_fallthru
    _
  // Predicated region
  $region10: #{en_unet_forward.1} parent=0 // pred_check
    _
  $region11: #{en_unet_forward.1} parent=0 // pred_check_branch
    %15 = sbr.rel (0) target = $region13
  $region12: #{en_unet_forward.1} parent=0 // pred_region
    _
  $region13: #{en_unet_forward.1} parent=0 // pred_fallthru
    _
  // Predicated region
  $region14: #{en_unet_forward.1} parent=0 // pred_check
    _
  $region15: #{en_unet_forward.1} parent=0 // pred_check_branch
    %17 = sbr.rel (0) target = $region17
  $region16: #{en_unet_forward.1} parent=0 // pred_region
    _
  $region17: #{en_unet_forward.1} parent=0 // pred_fallthru
    _
  // Predicated region
  $region18: #{en_unet_forward.1} parent=0 // pred_check
    _
  $region19: #{en_unet_forward.1} parent=0 // pred_check_branch
    %19 = sbr.rel (0) target = $region21
  $region20: #{en_unet_forward.1} parent=0 // pred_region
    _
  $region21: #{en_unet_forward.1} parent=0 // pred_fallthru
    _
  %v20 = vld [vmem:[%s4 + $0x30] sm:$0xff]
  %v21 = vld [vmem:[%s4 + $0x40] sm:$0xff]
  %v22 = vld [vmem:[%s4 + $0x50] sm:$0xff]
  %v23 = vld [vmem:[%s4 + $0x60] sm:$0xff]
  %v24 = vld [vmem:[%s4 + $0x70] sm:$0xff]
  %v25 = vld [vmem:[%s4 + $0x80] sm:$0xff]
  %v26 = vld [vmem:[%s4 + $0x90] sm:$0xff]
  %v27 = vld [vmem:[%s4 + $0xa0] sm:$0xff]
  %v28 = vld [vmem:[%s4 + $0xb0] sm:$0xff]
  %v29 = vld [vmem:[%s4 + $0xc0] sm:$0xff]
  %v30 = vld [vmem:[%s4 + $0xd0] sm:$0xff]
  %v31 = vld [vmem:[%s4 + $0xe0] sm:$0xff]
  %v32 = vld [vmem:[%s4 + $0xf0] sm:$0xff]
  %v33 = vld [vmem:[%s4 + $0x100] sm:$0xff]
  %v34 = vld [vmem:[%s4 + $0x110] sm:$0xff]
  %v35 = vld [vmem:[%s4 + $0x120] sm:$0xff]
  %v36 = vld [vmem:[%s0] sm:$0xff]
  %v37 = vld [vmem:[%s0 + $0x8] sm:$0xff]
  %v38 = vld [vmem:[%s0 + $0x10] sm:$0xff]
  %v39 = vld [vmem:[%s0 + $0x18] sm:$0xff]
  %v40 = vld [vmem:[%s1] sm:$0xff]
  %v41 = vld [vmem:[%s1 + $0x8] sm:$0xff]
  %v42 = vld [vmem:[%s1 + $0x10] sm:$0xff]
  %v43 = vld [vmem:[%s1 + $0x18] sm:$0xff]
  %v44 = vld [vmem:[%s1 + $0x20] sm:$0xff]
  %v45 = vld [vmem:[%s1 + $0x28] sm:$0xff]
  %v46 = vld [vmem:[%s1 + $0x30] sm:$0xff]
  %v47 = vld [vmem:[%s1 + $0x38] sm:$0xff]
  %v48 = vld [vmem:[%s1 + $0x40] sm:$0xff]
  %v49 = vld [vmem:[%s1 + $0x48] sm:$0xff]
  %v50 = vld [vmem:[%s1 + $0x50] sm:$0xff]
  %v51 = vld [vmem:[%s1 + $0x58] sm:$0xff]
  %v52 = vld [vmem:[%s1 + $0x60] sm:$0xff]
  %v53 = vld [vmem:[%s1 + $0x68] sm:$0xff]
  %v54 = vld [vmem:[%s1 + $0x70] sm:$0xff]
  %v55 = vld [vmem:[%s1 + $0x78] sm:$0xff]
  %v56 = vld [vmem:[%s1 + $0x80] sm:$0xff]
  %v57 = vld [vmem:[%s1 + $0x88] sm:$0xff]
  %v58 = vld [vmem:[%s1 + $0x90] sm:$0xff]
  %v59 = vld [vmem:[%s1 + $0x98] sm:$0xff]
  %v60 = vld [vmem:[%s1 + $0xa0] sm:$0xff]
  %v61 = vld [vmem:[%s1 + $0xa8] sm:$0xff]
  %v62 = vld [vmem:[%s1 + $0xb0] sm:$0xff]
  %v63 = vld [vmem:[%s1 + $0xb8] sm:$0xff]
  %vm64 = vcmask 261120
  %v66 = vsel %vm64, %v36, 0
  %v69 = vsel %vm64, %v37, 0
  %v72 = vsel %vm64, %v38, 0
  %v75 = vsel %vm64, %v39, 0
  %77 = vmatpush.msra.mxu0 0.0
  %78 = vmatpush.msra.mxu0 0.0
  %79 = vmatpush.msra.mxu0 0.0
  %80 = vmatpush.msra.mxu0 0.0
  %81 = vmatpush.msra.mxu0 0.0
  %82 = vmatpush.msra.mxu0 0.0
  %83 = vmatpush.msra.mxu0 0.0
  %84 = vmatpush.msra.mxu0 0.0
  %85 = vmatpush.msra.mxu0 0.0
  %86 = vmatpush.msra.mxu0 0.0
  %87 = vmatpush.msra.mxu0 0.0
  %88 = vmatpush.msra.mxu0 0.0
  %89 = vmatpush.msra.mxu0 %v58
  %90 = vmatpush.msra.mxu0 %v52
  %91 = vmatpush.msra.mxu0 %v46
  %92 = vmatpush.msra.mxu0 %v40
  %93 = vmatmul.f32.gmra.mxu0 %v66
  %v94 = vpop.f32.mrf.mxu0
  %v95 = vadd.f32 0.0, %v94
  %96 = vmatmul.f32.gmra.mxu0 %v69
  %v97 = vpop.f32.mrf.mxu0
  %v98 = vadd.f32 0.0, %v97
  %99 = vmatmul.f32.gmra.mxu0 %v72
  %v100 = vpop.f32.mrf.mxu0
  %v101 = vadd.f32 0.0, %v100
  %102 = vmatmul.f32.gmra.mxu0 %v75
  %v103 = vpop.f32.mrf.mxu0
  %v104 = vadd.f32 0.0, %v103
  %105 = vdwg.mxu0
  %106 = vmatpush.msra.mxu0 0.0
  %107 = vmatpush.msra.mxu0 0.0
  %108 = vmatpush.msra.mxu0 0.0
  %109 = vmatpush.msra.mxu0 0.0
  %110 = vmatpush.msra.mxu0 0.0
  %111 = vmatpush.msra.mxu0 0.0
  %112 = vmatpush.msra.mxu0 0.0
  %113 = vmatpush.msra.mxu0 0.0
  %114 = vmatpush.msra.mxu0 0.0
  %115 = vmatpush.msra.mxu0 0.0
  %116 = vmatpush.msra.mxu0 0.0
  %117 = vmatpush.msra.mxu0 0.0
  %118 = vmatpush.msra.mxu0 %v59
  %119 = vmatpush.msra.mxu0 %v53
  %120 = vmatpush.msra.mxu0 %v47
  %121 = vmatpush.msra.mxu0 %v41
  %122 = vmatmul.f32.gmra.mxu0 %v66
  %v123 = vpop.f32.mrf.mxu0
  %v124 = vadd.f32 0.0, %v123
  %125 = vmatmul.f32.gmra.mxu0 %v69
  %v126 = vpop.f32.mrf.mxu0
  %v127 = vadd.f32 0.0, %v126
  %128 = vmatmul.f32.gmra.mxu0 %v72
  %v129 = vpop.f32.mrf.mxu0
  %v130 = vadd.f32 0.0, %v129
  %131 = vmatmul.f32.gmra.mxu0 %v75
  %v132 = vpop.f32.mrf.mxu0
  %v133 = vadd.f32 0.0, %v132
  %134 = vdwg.mxu0
  %135 = vmatpush.msra.mxu0 0.0
  %136 = vmatpush.msra.mxu0 0.0
  %137 = vmatpush.msra.mxu0 0.0
  %138 = vmatpush.msra.mxu0 0.0
  %139 = vmatpush.msra.mxu0 0.0
  %140 = vmatpush.msra.mxu0 0.0
  %141 = vmatpush.msra.mxu0 0.0
  %142 = vmatpush.msra.mxu0 0.0
  %143 = vmatpush.msra.mxu0 0.0
  %144 = vmatpush.msra.mxu0 0.0
  %145 = vmatpush.msra.mxu0 0.0
  %146 = vmatpush.msra.mxu0 0.0
  %147 = vmatpush.msra.mxu0 %v60
  %148 = vmatpush.msra.mxu0 %v54
  %149 = vmatpush.msra.mxu0 %v48
  %150 = vmatpush.msra.mxu0 %v42
  %151 = vmatmul.f32.gmra.mxu0 %v66
  %v152 = vpop.f32.mrf.mxu0
  %v153 = vadd.f32 0.0, %v152
  %154 = vmatmul.f32.gmra.mxu0 %v69
  %v155 = vpop.f32.mrf.mxu0
  %v156 = vadd.f32 0.0, %v155
  %157 = vmatmul.f32.gmra.mxu0 %v72
  %v158 = vpop.f32.mrf.mxu0
  %v159 = vadd.f32 0.0, %v158
  %160 = vmatmul.f32.gmra.mxu0 %v75
  %v161 = vpop.f32.mrf.mxu0
  %v162 = vadd.f32 0.0, %v161
  %163 = vdwg.mxu0
  %164 = vmatpush.msra.mxu0 0.0
  %165 = vmatpush.msra.mxu0 0.0
  %166 = vmatpush.msra.mxu0 0.0
  %167 = vmatpush.msra.mxu0 0.0
  %168 = vmatpush.msra.mxu0 0.0
  %169 = vmatpush.msra.mxu0 0.0
  %170 = vmatpush.msra.mxu0 0.0
  %171 = vmatpush.msra.mxu0 0.0
  %172 = vmatpush.msra.mxu0 0.0
  %173 = vmatpush.msra.mxu0 0.0
  %174 = vmatpush.msra.mxu0 0.0
  %175 = vmatpush.msra.mxu0 0.0
  %176 = vmatpush.msra.mxu0 %v61
  %177 = vmatpush.msra.mxu0 %v55
  %178 = vmatpush.msra.mxu0 %v49
  %179 = vmatpush.msra.mxu0 %v43
  %180 = vmatmul.f32.gmra.mxu0 %v66
  %v181 = vpop.f32.mrf.mxu0
  %v182 = vadd.f32 0.0, %v181
  %183 = vmatmul.f32.gmra.mxu0 %v69
  %v184 = vpop.f32.mrf.mxu0
  %v185 = vadd.f32 0.0, %v184
  %186 = vmatmul.f32.gmra.mxu0 %v72
  %v187 = vpop.f32.mrf.mxu0
  %v188 = vadd.f32 0.0, %v187
  %189 = vmatmul.f32.gmra.mxu0 %v75
  %v190 = vpop.f32.mrf.mxu0
  %v191 = vadd.f32 0.0, %v190
  %192 = vdwg.mxu0
  %193 = vmatpush.msra.mxu0 0.0
  %194 = vmatpush.msra.mxu0 0.0
  %195 = vmatpush.msra.mxu0 0.0
  %196 = vmatpush.msra.mxu0 0.0
  %197 = vmatpush.msra.mxu0 0.0
  %198 = vmatpush.msra.mxu0 0.0
  %199 = vmatpush.msra.mxu0 0.0
  %200 = vmatpush.msra.mxu0 0.0
  %201 = vmatpush.msra.mxu0 0.0
  %202 = vmatpush.msra.mxu0 0.0
  %203 = vmatpush.msra.mxu0 0.0
  %204 = vmatpush.msra.mxu0 0.0
  %205 = vmatpush.msra.mxu0 %v62
  %206 = vmatpush.msra.mxu0 %v56
  %207 = vmatpush.msra.mxu0 %v50
  %208 = vmatpush.msra.mxu0 %v44
  %209 = vmatmul.f32.gmra.mxu0 %v66
  %v210 = vpop.f32.mrf.mxu0
  %v211 = vadd.f32 0.0, %v210
  %212 = vmatmul.f32.gmra.mxu0 %v69
  %v213 = vpop.f32.mrf.mxu0
  %v214 = vadd.f32 0.0, %v213
  %215 = vmatmul.f32.gmra.mxu0 %v72
  %v216 = vpop.f32.mrf.mxu0
  %v217 = vadd.f32 0.0, %v216
  %218 = vmatmul.f32.gmra.mxu0 %v75
  %v219 = vpop.f32.mrf.mxu0
  %v220 = vadd.f32 0.0, %v219
  %221 = vdwg.mxu0
  %222 = vmatpush.msra.mxu0 0.0
  %223 = vmatpush.msra.mxu0 0.0
  %224 = vmatpush.msra.mxu0 0.0
  %225 = vmatpush.msra.mxu0 0.0
  %226 = vmatpush.msra.mxu0 0.0
  %227 = vmatpush.msra.mxu0 0.0
  %228 = vmatpush.msra.mxu0 0.0
  %229 = vmatpush.msra.mxu0 0.0
  %230 = vmatpush.msra.mxu0 0.0
  %231 = vmatpush.msra.mxu0 0.0
  %232 = vmatpush.msra.mxu0 0.0
  %233 = vmatpush.msra.mxu0 0.0
  %234 = vmatpush.msra.mxu0 %v63
  %235 = vmatpush.msra.mxu0 %v57
  %236 = vmatpush.msra.mxu0 %v51
  %237 = vmatpush.msra.mxu0 %v45
  %238 = vmatmul.f32.gmra.mxu0 %v66
  %v239 = vpop.f32.mrf.mxu0
  %v240 = vadd.f32 0.0, %v239
  %241 = vmatmul.f32.gmra.mxu0 %v69
  %v242 = vpop.f32.mrf.mxu0
  %v243 = vadd.f32 0.0, %v242
  %244 = vmatmul.f32.gmra.mxu0 %v72
  %v245 = vpop.f32.mrf.mxu0
  %v246 = vadd.f32 0.0, %v245
  %247 = vmatmul.f32.gmra.mxu0 %v75
  %v248 = vpop.f32.mrf.mxu0
  %v249 = vadd.f32 0.0, %v248
  %250 = vdwg.mxu0
  %v251 = vld [vmem:[%s3] sm:$0xff]
  %v252 = vld [vmem:[%s3 + $0x8] sm:$0x7f]
  %v253 = vld [vmem:[%s3 + $0x10] sm:$0xff]
  %v254 = vld [vmem:[%s3 + $0x18] sm:$0x7f]
  %v256 = vsel %vm64, %v253, 0
  %v259 = vsel %vm64, %v254, 0
  %261 = vmatpush.msra.mxu0 0.0
  %262 = vmatpush.msra.mxu0 0.0
  %263 = vmatpush.msra.mxu0 0.0
  %264 = vmatpush.msra.mxu0 0.0
  %265 = vmatpush.msra.mxu0 0.0
  %266 = vmatpush.msra.mxu0 0.0
  %267 = vmatpush.msra.mxu0 0.0
  %268 = vmatpush.msra.mxu0 0.0
  %269 = vmatpush.msra.mxu0 0.0
  %270 = vmatpush.msra.mxu0 0.0
  %271 = vmatpush.msra.mxu0 0.0
  %272 = vmatpush.msra.mxu0 0.0
  %273 = vmatpush.msra.mxu0 %v162
  %274 = vmatpush.msra.mxu0 %v159
  %275 = vmatpush.msra.mxu0 %v156
  %276 = vmatpush.msra.mxu0 %v153
  %277 = vmatmul.f32.gmra.mxu0 %v256
  %v278 = vpop.f32.mrf.mxu0
  %v279 = vadd.f32 0.0, %v278
  %280 = vmatmul.f32.gmra.mxu0 %v259
  %v281 = vpop.f32.mrf.mxu0
  %v282 = vadd.f32 0.0, %v281
  %283 = vdwg.mxu0
  %284 = vmatpush.msra.mxu0 0.0
  %285 = vmatpush.msra.mxu0 0.0
  %286 = vmatpush.msra.mxu0 0.0
  %287 = vmatpush.msra.mxu0 0.0
  %288 = vmatpush.msra.mxu0 0.0
  %289 = vmatpush.msra.mxu0 0.0
  %290 = vmatpush.msra.mxu0 0.0
  %291 = vmatpush.msra.mxu0 0.0
  %292 = vmatpush.msra.mxu0 0.0
  %293 = vmatpush.msra.mxu0 0.0
  %294 = vmatpush.msra.mxu0 0.0
  %295 = vmatpush.msra.mxu0 0.0
  %296 = vmatpush.msra.mxu0 %v191
  %297 = vmatpush.msra.mxu0 %v188
  %298 = vmatpush.msra.mxu0 %v185
  %299 = vmatpush.msra.mxu0 %v182
  %300 = vmatmul.f32.gmra.mxu0 %v256
  %v301 = vpop.f32.mrf.mxu0
  %v302 = vadd.f32 0.0, %v301
  %303 = vmatmul.f32.gmra.mxu0 %v259
  %v304 = vpop.f32.mrf.mxu0
  %v305 = vadd.f32 0.0, %v304
  %306 = vdwg.mxu0
  %v308 = vsel %vm64, %v251, 0
  %v311 = vsel %vm64, %v252, 0
  %313 = vmatpush.msra.mxu0 0.0
  %314 = vmatpush.msra.mxu0 0.0
  %315 = vmatpush.msra.mxu0 0.0
  %316 = vmatpush.msra.mxu0 0.0
  %317 = vmatpush.msra.mxu0 0.0
  %318 = vmatpush.msra.mxu0 0.0
  %319 = vmatpush.msra.mxu0 0.0
  %320 = vmatpush.msra.mxu0 0.0
  %321 = vmatpush.msra.mxu0 0.0
  %322 = vmatpush.msra.mxu0 0.0
  %323 = vmatpush.msra.mxu0 0.0
  %324 = vmatpush.msra.mxu0 0.0
  %325 = vmatpush.msra.mxu0 %v104
  %326 = vmatpush.msra.mxu0 %v101
  %327 = vmatpush.msra.mxu0 %v98
  %328 = vmatpush.msra.mxu0 %v95
  %329 = vmatmul.f32.gmra.mxu0 %v308
  %v330 = vpop.f32.mrf.mxu0
  %v331 = vadd.f32 %v279, %v330
  %332 = vmatmul.f32.gmra.mxu0 %v311
  %v333 = vpop.f32.mrf.mxu0
  %v334 = vadd.f32 %v282, %v333
  %335 = vdwg.mxu0
  %336 = vmatpush.msra.mxu0 0.0
  %337 = vmatpush.msra.mxu0 0.0
  %338 = vmatpush.msra.mxu0 0.0
  %339 = vmatpush.msra.mxu0 0.0
  %340 = vmatpush.msra.mxu0 0.0
  %341 = vmatpush.msra.mxu0 0.0
  %342 = vmatpush.msra.mxu0 0.0
  %343 = vmatpush.msra.mxu0 0.0
  %344 = vmatpush.msra.mxu0 0.0
  %345 = vmatpush.msra.mxu0 0.0
  %346 = vmatpush.msra.mxu0 0.0
  %347 = vmatpush.msra.mxu0 0.0
  %348 = vmatpush.msra.mxu0 %v133
  %349 = vmatpush.msra.mxu0 %v130
  %350 = vmatpush.msra.mxu0 %v127
  %351 = vmatpush.msra.mxu0 %v124
  %352 = vmatmul.f32.gmra.mxu0 %v308
  %v353 = vpop.f32.mrf.mxu0
  %v354 = vadd.f32 %v302, %v353
  %355 = vmatmul.f32.gmra.mxu0 %v311
  %v356 = vpop.f32.mrf.mxu0
  %v357 = vadd.f32 %v305, %v356
  %358 = vdwg.mxu0
  %v359 = vld [vmem:[%s3 + $0x20] sm:$0xff]
  %v360 = vld [vmem:[%s3 + $0x28] sm:$0x7f]
  %v362 = vsel %vm64, %v359, 0
  %v365 = vsel %vm64, %v360, 0
  %367 = vmatpush.msra.mxu0 0.0
  %368 = vmatpush.msra.mxu0 0.0
  %369 = vmatpush.msra.mxu0 0.0
  %370 = vmatpush.msra.mxu0 0.0
  %371 = vmatpush.msra.mxu0 0.0
  %372 = vmatpush.msra.mxu0 0.0
  %373 = vmatpush.msra.mxu0 0.0
  %374 = vmatpush.msra.mxu0 0.0
  %375 = vmatpush.msra.mxu0 0.0
  %376 = vmatpush.msra.mxu0 0.0
  %377 = vmatpush.msra.mxu0 0.0
  %378 = vmatpush.msra.mxu0 0.0
  %379 = vmatpush.msra.mxu0 %v220
  %380 = vmatpush.msra.mxu0 %v217
  %381 = vmatpush.msra.mxu0 %v214
  %382 = vmatpush.msra.mxu0 %v211
  %383 = vmatmul.f32.gmra.mxu0 %v362
  %v384 = vpop.f32.mrf.mxu0
  %v385 = vadd.f32 0.0, %v384
  %386 = vmatmul.f32.gmra.mxu0 %v365
  %v387 = vpop.f32.mrf.mxu0
  %v388 = vadd.f32 0.0, %v387
  %389 = vdwg.mxu0
  %390 = vmatpush.msra.mxu0 0.0
  %391 = vmatpush.msra.mxu0 0.0
  %392 = vmatpush.msra.mxu0 0.0
  %393 = vmatpush.msra.mxu0 0.0
  %394 = vmatpush.msra.mxu0 0.0
  %395 = vmatpush.msra.mxu0 0.0
  %396 = vmatpush.msra.mxu0 0.0
  %397 = vmatpush.msra.mxu0 0.0
  %398 = vmatpush.msra.mxu0 0.0
  %399 = vmatpush.msra.mxu0 0.0
  %400 = vmatpush.msra.mxu0 0.0
  %401 = vmatpush.msra.mxu0 0.0
  %402 = vmatpush.msra.mxu0 %v249
  %403 = vmatpush.msra.mxu0 %v246
  %404 = vmatpush.msra.mxu0 %v243
  %405 = vmatpush.msra.mxu0 %v240
  %406 = vmatmul.f32.gmra.mxu0 %v362
  %v407 = vpop.f32.mrf.mxu0
  %v408 = vadd.f32 0.0, %v407
  %409 = vmatmul.f32.gmra.mxu0 %v365
  %v410 = vpop.f32.mrf.mxu0
  %v411 = vadd.f32 0.0, %v410
  %412 = vdwg.mxu0
  %v413 = vadd.f32 %v331, %v385
  %v414 = vadd.f32 %v354, %v408
  %v415 = vadd.f32 %v334, %v388
  %v416 = vadd.f32 %v357, %v411
  %v417 = vld [vmem:[%s4] ss:$8 sm:$0x3]
  %v419 = vperm.slane %v417, 0
  %v420 = vperm.slane %v417, 1
  %v423 = vadd.f32 %v413, %v419
  %v424 = vadd.f32 %v414, %v420
  %v425 = vadd.f32 %v415, %v419
  %v426 = vadd.f32 %v416, %v420
  %v427 = vsub.f32 0.0, %v424
  %v428 = vsub.f32 0.0, %v426
  %v429 = vmul.f32 %v427, 1.442695
  %v430 = vpow.pop %v429
  %v431 = vmul.f32 %v428, 1.442695
  %v432 = vpow.pop %v431
  %v433 = vadd.f32 %v430, 1.0
  %v434 = vadd.f32 %v432, 1.0
  %v435 = vrcp.pop %v433
  %v436 = vrcp.pop %v434
  %v437 = vmul.f32 %v423, %v435
  %v438 = vmul.f32 %v425, %v436
  %v439 = vld [vmem:[%s4 + $0x2] ss:$0 sm:$0xff]
  %v440 = vld [vmem:[%s4 + $0x3] ss:$0 sm:$0xff]
  %v441 = vld [vmem:[%s4 + $0x4] ss:$0 sm:$0xff]
  %vm442 = vcmask 1046528
  %v443 = vsel %vm442, %v438, 0.0
  %v444 = vadd.f32 %v437, %v443
  %v445 = vrot.slane %v444, 4
  %v446 = vadd.f32 %v444, %v445
  %v447 = vrot.slane %v446, 2
  %v448 = vadd.f32 %v446, %v447
  %v449 = vrot.slane %v448, 1
  %v450 = vadd.f32 %v448, %v449
  %v451 = vmul.f32 %v437, %v437
  %v452 = vmul.f32 %v438, %v438
  %v453 = vsel %vm442, %v452, 0.0
  %v454 = vadd.f32 %v451, %v453
  %v455 = vrot.slane %v454, 4
  %v456 = vadd.f32 %v454, %v455
  %v457 = vrot.slane %v456, 2
  %v458 = vadd.f32 %v456, %v457
  %v459 = vrot.slane %v458, 1
  %v460 = vadd.f32 %v458, %v459
  %vm461 = vcmask 1040384
  %v462 = vsel %vm461, %v450, %v460
  %463 = vmatpush.msra.mxu0 %v35
  %464 = vmatpush.msra.mxu0 %v34
  %465 = vmatpush.msra.mxu0 %v33
  %466 = vmatpush.msra.mxu0 %v32
  %467 = vmatpush.msra.mxu0 %v31
  %468 = vmatpush.msra.mxu0 %v30
  %469 = vmatpush.msra.mxu0 %v29
  %470 = vmatpush.msra.mxu0 %v28
  %471 = vmatpush.msra.mxu0 %v27
  %472 = vmatpush.msra.mxu0 %v26
  %473 = vmatpush.msra.mxu0 %v25
  %474 = vmatpush.msra.mxu0 %v24
  %475 = vmatpush.msra.mxu0 %v23
  %476 = vmatpush.msra.mxu0 %v22
  %477 = vmatpush.msra.mxu0 %v21
  %478 = vmatpush.msra.mxu0 %v20
  %479 = vmatmul.f32.gmra.mxu0 %v462
  %v480 = vpop.f32.mrf.mxu0
  %v481 = vadd.f32 0.0, %v480
  %482 = vdwg.mxu0
  %v483 = vmul.f32 %v481, 0.008333334
  %v484 = vmul.f32 %v483, %v483
  %v486 = vrot.slane %v484, 7
  %v488 = vsub.f32 %v483, %v486
  %v489 = vperm.slane %v483, 0
  %v490 = vsub.f32 %v437, %v489
  %v491 = vsub.f32 %v438, %v489
  %v492 = vadd.f32 %v488, 1e-05
  %v493 = vrsqrt.pop %v492
  %v494 = vmul.f32 %v493, %v492
  %v495 = vmul.f32 %v494, %v493
  %v496 = vmul.f32 0.5, %v495
  %v497 = vsub.f32 1.5, %v496
  %v498 = vmul.f32 %v493, %v497
  %vm499 = vweird.f32 %v492
  %vm500 = vweird.f32 %v493
  %vm501 = vmor %vm499, %vm500
  %v502 = vsel %vm501, %v493, %v498
  %v503 = vperm.slane %v502, 1
  %v504 = vmul.f32 %v490, %v503
  %v505 = vmul.f32 %v491, %v503
  %v506 = vmul.f32 %v504, %v439
  %v507 = vmul.f32 %v505, %v439
  %v508 = vadd.f32 %v506, %v440
  %v509 = vadd.f32 %v507, %v440
  %vm510 = vcmp.ge.f32.partialorder %v508, 0.0
  %vm511 = vcmp.ge.f32.partialorder %v509, 0.0
  %v512 = vmul.f32 %v441, %v508
  %v513 = vmul.f32 %v441, %v509
  %v514 = vsel %vm510, %v508, %v512
  %v515 = vsel %vm511, %v509, %v513
  %v516 = vld [vmem:[%s2] sm:$0xff]
  %v517 = vld [vmem:[%s2 + $0x8] sm:$0xff]
  %v518 = vld [vmem:[%s2 + $0x10] sm:$0xff]
  %v519 = vld [vmem:[%s2 + $0x18] sm:$0xff]
  %v520 = vld [vmem:[%s2 + $0x20] sm:$0xff]
  %v521 = vld [vmem:[%s2 + $0x28] sm:$0xff]
  %v522 = vld [vmem:[%s2 + $0x30] sm:$0xff]
  %v523 = vld [vmem:[%s2 + $0x38] sm:$0xff]
  %v524 = vld [vmem:[%s2 + $0x40] sm:$0xff]
  %v525 = vld [vmem:[%s2 + $0x48] sm:$0xff]
  %v526 = vld [vmem:[%s2 + $0x50] sm:$0xff]
  %v527 = vld [vmem:[%s2 + $0x58] sm:$0xff]
  %v528 = vld [vmem:[%s2 + $0x60] sm:$0xff]
  %v529 = vld [vmem:[%s2 + $0x68] sm:$0xff]
  %v530 = vld [vmem:[%s2 + $0x70] sm:$0xff]
  %v531 = vld [vmem:[%s2 + $0x78] sm:$0xff]
  %v532 = vld [vmem:[%s2 + $0x80] sm:$0xff]
  %v533 = vld [vmem:[%s2 + $0x88] sm:$0xff]
  %v534 = vld [vmem:[%s2 + $0x90] sm:$0xff]
  %v535 = vld [vmem:[%s2 + $0x98] sm:$0xff]
  %v536 = vld [vmem:[%s2 + $0xa0] sm:$0xff]
  %v537 = vld [vmem:[%s2 + $0xa8] sm:$0xff]
  %v538 = vld [vmem:[%s2 + $0xb0] sm:$0xff]
  %v539 = vld [vmem:[%s2 + $0xb8] sm:$0xff]
  %v540 = vld [vmem:[%s2 + $0xc0] sm:$0xff]
  %v541 = vld [vmem:[%s2 + $0xc8] sm:$0xff]
  %v542 = vld [vmem:[%s2 + $0xd0] sm:$0xff]
  %v543 = vld [vmem:[%s2 + $0xd8] sm:$0xff]
  %v544 = vld [vmem:[%s2 + $0xe0] sm:$0xff]
  %v545 = vld [vmem:[%s2 + $0xe8] sm:$0xff]
  %v546 = vld [vmem:[%s2 + $0xf0] sm:$0xff]
  %v547 = vld [vmem:[%s2 + $0xf8] sm:$0xff]
  %v548 = vld [vmem:[%s2 + $0x100] sm:$0xff]
  %v549 = vld [vmem:[%s2 + $0x108] sm:$0xff]
  %v550 = vld [vmem:[%s2 + $0x110] sm:$0xff]
  %v551 = vld [vmem:[%s2 + $0x118] sm:$0xff]
  %v552 = vld [vmem:[%s2 + $0x120] sm:$0xff]
  %v553 = vld [vmem:[%s2 + $0x128] sm:$0xff]
  %v554 = vld [vmem:[%s2 + $0x130] sm:$0xff]
  %v555 = vld [vmem:[%s2 + $0x138] sm:$0xff]
  %v556 = vld [vmem:[%s2 + $0x140] sm:$0xff]
  %v557 = vld [vmem:[%s2 + $0x148] sm:$0xff]
  %v558 = vld [vmem:[%s2 + $0x150] sm:$0xff]
  %v559 = vld [vmem:[%s2 + $0x158] sm:$0xff]
  %v560 = vld [vmem:[%s2 + $0x160] sm:$0xff]
  %v561 = vld [vmem:[%s2 + $0x168] sm:$0xff]
  %v562 = vld [vmem:[%s2 + $0x170] sm:$0xff]
  %v563 = vld [vmem:[%s2 + $0x178] sm:$0xff]
  %564 = vmatpush.msra.mxu0 %v561
  %565 = vmatpush.msra.mxu0 %v558
  %566 = vmatpush.msra.mxu0 %v555
  %567 = vmatpush.msra.mxu0 %v552
  %568 = vmatpush.msra.mxu0 %v549
  %569 = vmatpush.msra.mxu0 %v546
  %570 = vmatpush.msra.mxu0 %v543
  %571 = vmatpush.msra.mxu0 %v540
  %572 = vmatpush.msra.mxu0 %v537
  %573 = vmatpush.msra.mxu0 %v534
  %574 = vmatpush.msra.mxu0 %v531
  %575 = vmatpush.msra.mxu0 %v528
  %576 = vmatpush.msra.mxu0 %v525
  %577 = vmatpush.msra.mxu0 %v522
  %578 = vmatpush.msra.mxu0 %v519
  %579 = vmatpush.msra.mxu0 %v516
  %580 = vmatmul.f32.gmra.mxu0 %v514
  %v581 = vpop.f32.mrf.mxu0
  %v582 = vadd.f32 0.0, %v581
  %583 = vmatmul.f32.gmra.mxu0 %v515
  %v584 = vpop.f32.mrf.mxu0
  %v585 = vadd.f32 0.0, %v584
  %586 = vdwg.mxu0
  %587 = vmatpush.msra.mxu0 %v562
  %588 = vmatpush.msra.mxu0 %v559
  %589 = vmatpush.msra.mxu0 %v556
  %590 = vmatpush.msra.mxu0 %v553
  %591 = vmatpush.msra.mxu0 %v550
  %592 = vmatpush.msra.mxu0 %v547
  %593 = vmatpush.msra.mxu0 %v544
  %594 = vmatpush.msra.mxu0 %v541
  %595 = vmatpush.msra.mxu0 %v538
  %596 = vmatpush.msra.mxu0 %v535
  %597 = vmatpush.msra.mxu0 %v532
  %598 = vmatpush.msra.mxu0 %v529
  %599 = vmatpush.msra.mxu0 %v526
  %600 = vmatpush.msra.mxu0 %v523
  %601 = vmatpush.msra.mxu0 %v520
  %602 = vmatpush.msra.mxu0 %v517
  %603 = vmatmul.f32.gmra.mxu0 %v514
  %v604 = vpop.f32.mrf.mxu0
  %v605 = vadd.f32 0.0, %v604
  %606 = vmatmul.f32.gmra.mxu0 %v515
  %v607 = vpop.f32.mrf.mxu0
  %v608 = vadd.f32 0.0, %v607
  %609 = vdwg.mxu0
  %610 = vmatpush.msra.mxu0 %v563
  %611 = vmatpush.msra.mxu0 %v560
  %612 = vmatpush.msra.mxu0 %v557
  %613 = vmatpush.msra.mxu0 %v554
  %614 = vmatpush.msra.mxu0 %v551
  %615 = vmatpush.msra.mxu0 %v548
  %616 = vmatpush.msra.mxu0 %v545
  %617 = vmatpush.msra.mxu0 %v542
  %618 = vmatpush.msra.mxu0 %v539
  %619 = vmatpush.msra.mxu0 %v536
  %620 = vmatpush.msra.mxu0 %v533
  %621 = vmatpush.msra.mxu0 %v530
  %622 = vmatpush.msra.mxu0 %v527
  %623 = vmatpush.msra.mxu0 %v524
  %624 = vmatpush.msra.mxu0 %v521
  %625 = vmatpush.msra.mxu0 %v518
  %626 = vmatmul.f32.gmra.mxu0 %v514
  %v627 = vpop.f32.mrf.mxu0
  %v628 = vadd.f32 0.0, %v627
  %629 = vmatmul.f32.gmra.mxu0 %v515
  %v630 = vpop.f32.mrf.mxu0
  %v631 = vadd.f32 0.0, %v630
  %632 = vdwg.mxu0
  %v633 = vld [vmem:[%s3 + $0x30] sm:$0x7f]
  %v634 = vld [vmem:[%s3 + $0x38] sm:$0x7f]
  %vm635 = vcmask 121856
  %v637 = vsel %vm635, %v634, 0
  %v640 = vsel %vm442, %v608, 0
  %642 = vmatpush.msra.mxu0 0.0
  %643 = vmatpush.msra.mxu0 0.0
  %644 = vmatpush.msra.mxu0 0.0
  %645 = vmatpush.msra.mxu0 0.0
  %646 = vmatpush.msra.mxu0 0.0
  %647 = vmatpush.msra.mxu0 0.0
  %648 = vmatpush.msra.mxu0 0.0
  %649 = vmatpush.msra.mxu0 0.0
  %650 = vmatpush.msra.mxu0 0.0
  %651 = vmatpush.msra.mxu0 0.0
  %652 = vmatpush.msra.mxu0 0.0
  %653 = vmatpush.msra.mxu0 0.0
  %654 = vmatpush.msra.mxu0 0.0
  %655 = vmatpush.msra.mxu0 0.0
  %656 = vmatpush.msra.mxu0 %v640
  %657 = vmatpush.msra.mxu0 %v605
  %658 = vmatmul.f32.gmra.mxu0 %v637
  %v659 = vpop.f32.mrf.mxu0
  %v660 = vadd.f32 0.0, %v659
  %661 = vdwg.mxu0
  %v663 = vsel %vm635, %v633, 0
  %v666 = vsel %vm442, %v585, 0
  %668 = vmatpush.msra.mxu0 0.0
  %669 = vmatpush.msra.mxu0 0.0
  %670 = vmatpush.msra.mxu0 0.0
  %671 = vmatpush.msra.mxu0 0.0
  %672 = vmatpush.msra.mxu0 0.0
  %673 = vmatpush.msra.mxu0 0.0
  %674 = vmatpush.msra.mxu0 0.0
  %675 = vmatpush.msra.mxu0 0.0
  %676 = vmatpush.msra.mxu0 0.0
  %677 = vmatpush.msra.mxu0 0.0
  %678 = vmatpush.msra.mxu0 0.0
  %679 = vmatpush.msra.mxu0 0.0
  %680 = vmatpush.msra.mxu0 0.0
  %681 = vmatpush.msra.mxu0 0.0
  %682 = vmatpush.msra.mxu0 %v666
  %683 = vmatpush.msra.mxu0 %v582
  %684 = vmatmul.f32.gmra.mxu0 %v663
  %v685 = vpop.f32.mrf.mxu0
  %v686 = vadd.f32 %v660, %v685
  %687 = vdwg.mxu0
  %v688 = vld [vmem:[%s3 + $0x40] sm:$0x7f]
  %v690 = vsel %vm635, %v688, 0
  %v693 = vsel %vm442, %v631, 0
  %695 = vmatpush.msra.mxu0 0.0
  %696 = vmatpush.msra.mxu0 0.0
  %697 = vmatpush.msra.mxu0 0.0
  %698 = vmatpush.msra.mxu0 0.0
  %699 = vmatpush.msra.mxu0 0.0
  %700 = vmatpush.msra.mxu0 0.0
  %701 = vmatpush.msra.mxu0 0.0
  %702 = vmatpush.msra.mxu0 0.0
  %703 = vmatpush.msra.mxu0 0.0
  %704 = vmatpush.msra.mxu0 0.0
  %705 = vmatpush.msra.mxu0 0.0
  %706 = vmatpush.msra.mxu0 0.0
  %707 = vmatpush.msra.mxu0 0.0
  %708 = vmatpush.msra.mxu0 0.0
  %709 = vmatpush.msra.mxu0 %v693
  %710 = vmatpush.msra.mxu0 %v628
  %711 = vmatmul.f32.gmra.mxu0 %v690
  %v712 = vpop.f32.mrf.mxu0
  %v713 = vadd.f32 0.0, %v712
  %714 = vdwg.mxu0
  %v715 = vadd.f32 %v686, %v713
  %v716 = vld [vmem:[%s4 + $0x5] ss:$0 sm:$0xff]
  %v717 = vadd.f32 %v715, %v716
  %v718 = vld [vmem:[%s4 + $0x6] ss:$0 sm:$0xff]
  %v719 = vld [vmem:[%s4 + $0x7] ss:$0 sm:$0xff]
  %v720 = vld [vmem:[%s4 + $0x10] ss:$0 sm:$0xff]
  %v721 = vsel %vm442, %v717, 0.0
  %v722 = vrot.slane %v721, 4
  %v723 = vadd.f32 %v721, %v722
  %v724 = vrot.slane %v723, 2
  %v725 = vadd.f32 %v723, %v724
  %v726 = vrot.slane %v725, 1
  %v727 = vadd.f32 %v725, %v726
  %v728 = vmul.f32 %v717, %v717
  %v729 = vsel %vm442, %v728, 0.0
  %v730 = vrot.slane %v729, 4
  %v731 = vadd.f32 %v729, %v730
  %v732 = vrot.slane %v731, 2
  %v733 = vadd.f32 %v731, %v732
  %v734 = vrot.slane %v733, 1
  %v735 = vadd.f32 %v733, %v734
  %v736 = vsel %vm461, %v727, %v735
  %737 = vmatpush.msra.mxu0 %v35
  %738 = vmatpush.msra.mxu0 %v34
  %739 = vmatpush.msra.mxu0 %v33
  %740 = vmatpush.msra.mxu0 %v32
  %741 = vmatpush.msra.mxu0 %v31
  %742 = vmatpush.msra.mxu0 %v30
  %743 = vmatpush.msra.mxu0 %v29
  %744 = vmatpush.msra.mxu0 %v28
  %745 = vmatpush.msra.mxu0 %v27
  %746 = vmatpush.msra.mxu0 %v26
  %747 = vmatpush.msra.mxu0 %v25
  %748 = vmatpush.msra.mxu0 %v24
  %749 = vmatpush.msra.mxu0 %v23
  %750 = vmatpush.msra.mxu0 %v22
  %751 = vmatpush.msra.mxu0 %v21
  %752 = vmatpush.msra.mxu0 %v20
  %753 = vmatmul.f32.gmra.mxu0 %v736
  %v754 = vpop.f32.mrf.mxu0
  %v755 = vadd.f32 0.0, %v754
  %756 = vdwg.mxu0
  %v757 = vmul.f32 %v755, 0.017857144
  %v758 = vmul.f32 %v757, %v757
  %v760 = vrot.slane %v758, 7
  %v762 = vsub.f32 %v757, %v760
  %v763 = vperm.slane %v757, 0
  %v764 = vsub.f32 %v717, %v763
  %v765 = vadd.f32 %v762, 1e-05
  %v766 = vrsqrt.pop %v765
  %v767 = vmul.f32 %v766, %v765
  %v768 = vmul.f32 %v767, %v766
  %v769 = vmul.f32 0.5, %v768
  %v770 = vsub.f32 1.5, %v769
  %v771 = vmul.f32 %v766, %v770
  %vm772 = vweird.f32 %v765
  %vm773 = vweird.f32 %v766
  %vm774 = vmor %vm772, %vm773
  %v775 = vsel %vm774, %v766, %v771
  %v776 = vperm.slane %v775, 1
  %v777 = vmul.f32 %v764, %v776
  %v778 = vmul.f32 %v777, %v718
  %v779 = vadd.f32 %v778, %v719
  %vm780 = vcmp.ge.f32.partialorder %v779, 0.0
  %v781 = vmul.f32 %v720, %v779
  %v782 = vsel %vm780, %v779, %v781
  %v783 = vld [vmem:[%s2 + $0x180] sm:$0xff]
  %v784 = vld [vmem:[%s2 + $0x188] sm:$0xff]
  %v785 = vld [vmem:[%s2 + $0x190] sm:$0xff]
  %v786 = vld [vmem:[%s2 + $0x198] sm:$0xff]
  %v787 = vld [vmem:[%s2 + $0x1a0] sm:$0xff]
  %v788 = vld [vmem:[%s2 + $0x1a8] sm:$0xff]
  %v789 = vld [vmem:[%s2 + $0x1b0] sm:$0xff]
  %v790 = vld [vmem:[%s2 + $0x1b8] sm:$0xff]
  %v791 = vld [vmem:[%s2 + $0x1c0] sm:$0xff]
  %v792 = vld [vmem:[%s2 + $0x1c8] sm:$0xff]
  %v793 = vld [vmem:[%s2 + $0x1d0] sm:$0xff]
  %v794 = vld [vmem:[%s2 + $0x1d8] sm:$0xff]
  %v795 = vld [vmem:[%s2 + $0x1e0] sm:$0xff]
  %v796 = vld [vmem:[%s2 + $0x1e8] sm:$0xff]
  %v797 = vld [vmem:[%s2 + $0x1f0] sm:$0xff]
  %v798 = vld [vmem:[%s2 + $0x1f8] sm:$0xff]
  %v799 = vld [vmem:[%s2 + $0x200] sm:$0xff]
  %v800 = vld [vmem:[%s2 + $0x208] sm:$0xff]
  %v801 = vld [vmem:[%s2 + $0x210] sm:$0xff]
  %v802 = vld [vmem:[%s2 + $0x218] sm:$0xff]
  %v803 = vld [vmem:[%s2 + $0x220] sm:$0xff]
  %v804 = vld [vmem:[%s2 + $0x228] sm:$0xff]
  %v805 = vld [vmem:[%s2 + $0x230] sm:$0xff]
  %v806 = vld [vmem:[%s2 + $0x238] sm:$0xff]
  %v807 = vld [vmem:[%s2 + $0x240] sm:$0xff]
  %v808 = vld [vmem:[%s2 + $0x248] sm:$0xff]
  %v809 = vld [vmem:[%s2 + $0x250] sm:$0xff]
  %v810 = vld [vmem:[%s2 + $0x258] sm:$0xff]
  %v811 = vld [vmem:[%s2 + $0x260] sm:$0xff]
  %v812 = vld [vmem:[%s2 + $0x268] sm:$0xff]
  %v813 = vld [vmem:[%s2 + $0x270] sm:$0xff]
  %v814 = vld [vmem:[%s2 + $0x278] sm:$0xff]
  %v815 = vld [vmem:[%s2 + $0x280] sm:$0xff]
  %v816 = vld [vmem:[%s2 + $0x288] sm:$0xff]
  %v817 = vld [vmem:[%s2 + $0x290] sm:$0xff]
  %v818 = vld [vmem:[%s2 + $0x298] sm:$0xff]
  %v819 = vld [vmem:[%s2 + $0x2a0] sm:$0xff]
  %v820 = vld [vmem:[%s2 + $0x2a8] sm:$0xff]
  %v821 = vld [vmem:[%s2 + $0x2b0] sm:$0xff]
  %v822 = vld [vmem:[%s2 + $0x2b8] sm:$0xff]
  %v823 = vld [vmem:[%s2 + $0x2c0] sm:$0xff]
  %v824 = vld [vmem:[%s2 + $0x2c8] sm:$0xff]
  %v825 = vld [vmem:[%s2 + $0x2d0] sm:$0xff]
  %v826 = vld [vmem:[%s2 + $0x2d8] sm:$0xff]
  %v827 = vld [vmem:[%s2 + $0x2e0] sm:$0xff]
  %v828 = vld [vmem:[%s2 + $0x2e8] sm:$0xff]
  %v829 = vld [vmem:[%s2 + $0x2f0] sm:$0xff]
  %v830 = vld [vmem:[%s2 + $0x2f8] sm:$0xff]
  %831 = vmatpush.msra.mxu0 %v828
  %832 = vmatpush.msra.mxu0 %v825
  %833 = vmatpush.msra.mxu0 %v822
  %834 = vmatpush.msra.mxu0 %v819
  %835 = vmatpush.msra.mxu0 %v816
  %836 = vmatpush.msra.mxu0 %v813
  %837 = vmatpush.msra.mxu0 %v810
  %838 = vmatpush.msra.mxu0 %v807
  %839 = vmatpush.msra.mxu0 %v804
  %840 = vmatpush.msra.mxu0 %v801
  %841 = vmatpush.msra.mxu0 %v798
  %842 = vmatpush.msra.mxu0 %v795
  %843 = vmatpush.msra.mxu0 %v792
  %844 = vmatpush.msra.mxu0 %v789
  %845 = vmatpush.msra.mxu0 %v786
  %846 = vmatpush.msra.mxu0 %v783
  %847 = vmatmul.f32.gmra.mxu0 %v782
  %v848 = vpop.f32.mrf.mxu0
  %v849 = vadd.f32 0.0, %v848
  %850 = vdwg.mxu0
  %851 = vmatpush.msra.mxu0 %v829
  %852 = vmatpush.msra.mxu0 %v826
  %853 = vmatpush.msra.mxu0 %v823
  %854 = vmatpush.msra.mxu0 %v820
  %855 = vmatpush.msra.mxu0 %v817
  %856 = vmatpush.msra.mxu0 %v814
  %857 = vmatpush.msra.mxu0 %v811
  %858 = vmatpush.msra.mxu0 %v808
  %859 = vmatpush.msra.mxu0 %v805
  %860 = vmatpush.msra.mxu0 %v802
  %861 = vmatpush.msra.mxu0 %v799
  %862 = vmatpush.msra.mxu0 %v796
  %863 = vmatpush.msra.mxu0 %v793
  %864 = vmatpush.msra.mxu0 %v790
  %865 = vmatpush.msra.mxu0 %v787
  %866 = vmatpush.msra.mxu0 %v784
  %867 = vmatmul.f32.gmra.mxu0 %v782
  %v868 = vpop.f32.mrf.mxu0
  %v869 = vadd.f32 0.0, %v868
  %870 = vdwg.mxu0
  %871 = vmatpush.msra.mxu0 %v830
  %872 = vmatpush.msra.mxu0 %v827
  %873 = vmatpush.msra.mxu0 %v824
  %874 = vmatpush.msra.mxu0 %v821
  %875 = vmatpush.msra.mxu0 %v818
  %876 = vmatpush.msra.mxu0 %v815
  %877 = vmatpush.msra.mxu0 %v812
  %878 = vmatpush.msra.mxu0 %v809
  %879 = vmatpush.msra.mxu0 %v806
  %880 = vmatpush.msra.mxu0 %v803
  %881 = vmatpush.msra.mxu0 %v800
  %882 = vmatpush.msra.mxu0 %v797
  %883 = vmatpush.msra.mxu0 %v794
  %884 = vmatpush.msra.mxu0 %v791
  %885 = vmatpush.msra.mxu0 %v788
  %886 = vmatpush.msra.mxu0 %v785
  %887 = vmatmul.f32.gmra.mxu0 %v782
  %v888 = vpop.f32.mrf.mxu0
  %v889 = vadd.f32 0.0, %v888
  %890 = vdwg.mxu0
  %v891 = vld [vmem:[%s3 + $0x48] sm:$0x7]
  %v892 = vld [vmem:[%s3 + $0x50] sm:$0x7]
  %vm893 = vcmask 56320
  %v895 = vsel %vm893, %v892, 0
  %v898 = vsel %vm442, %v869, 0
  %900 = vmatpush.msra.mxu0 0.0
  %901 = vmatpush.msra.mxu0 0.0
  %902 = vmatpush.msra.mxu0 0.0
  %903 = vmatpush.msra.mxu0 0.0
  %904 = vmatpush.msra.mxu0 0.0
  %905 = vmatpush.msra.mxu0 0.0
  %906 = vmatpush.msra.mxu0 0.0
  %907 = vmatpush.msra.mxu0 0.0
  %908 = vmatpush.msra.mxu0 0.0
  %909 = vmatpush.msra.mxu0 0.0
  %910 = vmatpush.msra.mxu0 0.0
  %911 = vmatpush.msra.mxu0 0.0
  %912 = vmatpush.msra.mxu0 0.0
  %913 = vmatpush.msra.mxu0 0.0
  %914 = vmatpush.msra.mxu0 0.0
  %915 = vmatpush.msra.mxu0 %v898
  %916 = vmatmul.f32.gmra.mxu0 %v895
  %v917 = vpop.f32.mrf.mxu0
  %v918 = vadd.f32 0.0, %v917
  %919 = vdwg.mxu0
  %v921 = vsel %vm893, %v891, 0
  %v924 = vsel %vm442, %v849, 0
  %926 = vmatpush.msra.mxu0 0.0
  %927 = vmatpush.msra.mxu0 0.0
  %928 = vmatpush.msra.mxu0 0.0
  %929 = vmatpush.msra.mxu0 0.0
  %930 = vmatpush.msra.mxu0 0.0
  %931 = vmatpush.msra.mxu0 0.0
  %932 = vmatpush.msra.mxu0 0.0
  %933 = vmatpush.msra.mxu0 0.0
  %934 = vmatpush.msra.mxu0 0.0
  %935 = vmatpush.msra.mxu0 0.0
  %936 = vmatpush.msra.mxu0 0.0
  %937 = vmatpush.msra.mxu0 0.0
  %938 = vmatpush.msra.mxu0 0.0
  %939 = vmatpush.msra.mxu0 0.0
  %940 = vmatpush.msra.mxu0 0.0
  %941 = vmatpush.msra.mxu0 %v924
  %942 = vmatmul.f32.gmra.mxu0 %v921
  %v943 = vpop.f32.mrf.mxu0
  %v944 = vadd.f32 %v918, %v943
  %945 = vdwg.mxu0
  %v946 = vld [vmem:[%s3 + $0x58] sm:$0x7]
  %v948 = vsel %vm893, %v946, 0
  %v951 = vsel %vm442, %v889, 0
  %953 = vmatpush.msra.mxu0 0.0
  %954 = vmatpush.msra.mxu0 0.0
  %955 = vmatpush.msra.mxu0 0.0
  %956 = vmatpush.msra.mxu0 0.0
  %957 = vmatpush.msra.mxu0 0.0
  %958 = vmatpush.msra.mxu0 0.0
  %959 = vmatpush.msra.mxu0 0.0
  %960 = vmatpush.msra.mxu0 0.0
  %961 = vmatpush.msra.mxu0 0.0
  %962 = vmatpush.msra.mxu0 0.0
  %963 = vmatpush.msra.mxu0 0.0
  %964 = vmatpush.msra.mxu0 0.0
  %965 = vmatpush.msra.mxu0 0.0
  %966 = vmatpush.msra.mxu0 0.0
  %967 = vmatpush.msra.mxu0 0.0
  %968 = vmatpush.msra.mxu0 %v951
  %969 = vmatmul.f32.gmra.mxu0 %v948
  %v970 = vpop.f32.mrf.mxu0
  %v971 = vadd.f32 0.0, %v970
  %972 = vdwg.mxu0
  %v973 = vadd.f32 %v944, %v971
  %v974 = vld [vmem:[%s4 + $0x11] ss:$0 sm:$0xff]
  %v975 = vadd.f32 %v973, %v974
  %v976 = vld [vmem:[%s4 + $0x12] ss:$0 sm:$0xff]
  %v977 = vld [vmem:[%s4 + $0x13] ss:$0 sm:$0xff]
  %v978 = vld [vmem:[%s4 + $0x14] ss:$0 sm:$0xff]
  %vm979 = vcmask 1042432
  %v980 = vsel %vm979, %v975, 0.0
  %v981 = vrot.slane %v980, 4
  %v982 = vadd.f32 %v980, %v981
  %v983 = vrot.slane %v982, 2
  %v984 = vadd.f32 %v982, %v983
  %v985 = vrot.slane %v984, 1
  %v986 = vadd.f32 %v984, %v985
  %v987 = vmul.f32 %v975, %v975
  %v988 = vsel %vm979, %v987, 0.0
  %v989 = vrot.slane %v988, 4
  %v990 = vadd.f32 %v988, %v989
  %v991 = vrot.slane %v990, 2
  %v992 = vadd.f32 %v990, %v991
  %v993 = vrot.slane %v992, 1
  %v994 = vadd.f32 %v992, %v993
  %v995 = vsel %vm461, %v986, %v994
  %996 = vmatpush.msra.mxu0 %v35
  %997 = vmatpush.msra.mxu0 %v34
  %998 = vmatpush.msra.mxu0 %v33
  %999 = vmatpush.msra.mxu0 %v32
  %1000 = vmatpush.msra.mxu0 %v31
  %1001 = vmatpush.msra.mxu0 %v30
  %1002 = vmatpush.msra.mxu0 %v29
  %1003 = vmatpush.msra.mxu0 %v28
  %1004 = vmatpush.msra.mxu0 %v27
  %1005 = vmatpush.msra.mxu0 %v26
  %1006 = vmatpush.msra.mxu0 %v25
  %1007 = vmatpush.msra.mxu0 %v24
  %1008 = vmatpush.msra.mxu0 %v23
  %1009 = vmatpush.msra.mxu0 %v22
  %1010 = vmatpush.msra.mxu0 %v21
  %1011 = vmatpush.msra.mxu0 %v20
  %1012 = vmatmul.f32.gmra.mxu0 %v995
  %v1013 = vpop.f32.mrf.mxu0
  %v1014 = vadd.f32 0.0, %v1013
  %1015 = vdwg.mxu0
  %v1016 = vmul.f32 %v1014, 0.041666668
  %v1017 = vmul.f32 %v1016, %v1016
  %v1019 = vrot.slane %v1017, 7
  %v1021 = vsub.f32 %v1016, %v1019
  %v1022 = vperm.slane %v1016, 0
  %v1023 = vsub.f32 %v975, %v1022
  %v1024 = vadd.f32 %v1021, 1e-05
  %v1025 = vrsqrt.pop %v1024
  %v1026 = vmul.f32 %v1025, %v1024
  %v1027 = vmul.f32 %v1026, %v1025
  %v1028 = vmul.f32 0.5, %v1027
  %v1029 = vsub.f32 1.5, %v1028
  %v1030 = vmul.f32 %v1025, %v1029
  %vm1031 = vweird.f32 %v1024
  %vm1032 = vweird.f32 %v1025
  %vm1033 = vmor %vm1031, %vm1032
  %v1034 = vsel %vm1033, %v1025, %v1030
  %v1035 = vperm.slane %v1034, 1
  %v1036 = vmul.f32 %v1023, %v1035
  %v1037 = vmul.f32 %v1036, %v976
  %v1038 = vadd.f32 %v1037, %v977
  %vm1039 = vcmp.ge.f32.partialorder %v1038, 0.0
  %v1040 = vmul.f32 %v978, %v1038
  %v1041 = vsel %vm1039, %v1038, %v1040
  %v1042 = vld [vmem:[%s2 + $0x300] sm:$0xff]
  %v1043 = vld [vmem:[%s2 + $0x308] sm:$0xff]
  %v1044 = vld [vmem:[%s2 + $0x310] sm:$0xff]
  %v1045 = vld [vmem:[%s2 + $0x318] sm:$0xff]
  %v1046 = vld [vmem:[%s2 + $0x320] sm:$0xff]
  %v1047 = vld [vmem:[%s2 + $0x328] sm:$0xff]
  %v1048 = vld [vmem:[%s2 + $0x330] sm:$0xff]
  %v1049 = vld [vmem:[%s2 + $0x338] sm:$0xff]
  %v1050 = vld [vmem:[%s2 + $0x340] sm:$0xff]
  %v1051 = vld [vmem:[%s2 + $0x348] sm:$0xff]
  %v1052 = vld [vmem:[%s2 + $0x350] sm:$0xff]
  %v1053 = vld [vmem:[%s2 + $0x358] sm:$0xff]
  %v1054 = vld [vmem:[%s2 + $0x360] sm:$0xff]
  %v1055 = vld [vmem:[%s2 + $0x368] sm:$0xff]
  %v1056 = vld [vmem:[%s2 + $0x370] sm:$0xff]
  %v1057 = vld [vmem:[%s2 + $0x378] sm:$0xff]
  %v1058 = vld [vmem:[%s2 + $0x380] sm:$0xff]
  %v1059 = vld [vmem:[%s2 + $0x388] sm:$0xff]
  %v1060 = vld [vmem:[%s2 + $0x390] sm:$0xff]
  %v1061 = vld [vmem:[%s2 + $0x398] sm:$0xff]
  %v1062 = vld [vmem:[%s2 + $0x3a0] sm:$0xff]
  %v1063 = vld [vmem:[%s2 + $0x3a8] sm:$0xff]
  %v1064 = vld [vmem:[%s2 + $0x3b0] sm:$0xff]
  %v1065 = vld [vmem:[%s2 + $0x3b8] sm:$0xff]
  %v1066 = vld [vmem:[%s2 + $0x3c0] sm:$0xff]
  %v1067 = vld [vmem:[%s2 + $0x3c8] sm:$0xff]
  %v1068 = vld [vmem:[%s2 + $0x3d0] sm:$0xff]
  %v1069 = vld [vmem:[%s2 + $0x3d8] sm:$0xff]
  %v1070 = vld [vmem:[%s2 + $0x3e0] sm:$0xff]
  %v1071 = vld [vmem:[%s2 + $0x3e8] sm:$0xff]
  %v1072 = vld [vmem:[%s2 + $0x3f0] sm:$0xff]
  %v1073 = vld [vmem:[%s2 + $0x3f8] sm:$0xff]
  %v1074 = vld [vmem:[%s2 + $0x400] sm:$0xff]
  %v1075 = vld [vmem:[%s2 + $0x408] sm:$0xff]
  %v1076 = vld [vmem:[%s2 + $0x410] sm:$0xff]
  %v1077 = vld [vmem:[%s2 + $0x418] sm:$0xff]
  %v1078 = vld [vmem:[%s2 + $0x420] sm:$0xff]
  %v1079 = vld [vmem:[%s2 + $0x428] sm:$0xff]
  %v1080 = vld [vmem:[%s2 + $0x430] sm:$0xff]
  %v1081 = vld [vmem:[%s2 + $0x438] sm:$0xff]
  %v1082 = vld [vmem:[%s2 + $0x440] sm:$0xff]
  %v1083 = vld [vmem:[%s2 + $0x448] sm:$0xff]
  %v1084 = vld [vmem:[%s2 + $0x450] sm:$0xff]
  %v1085 = vld [vmem:[%s2 + $0x458] sm:$0xff]
  %v1086 = vld [vmem:[%s2 + $0x460] sm:$0xff]
  %v1087 = vld [vmem:[%s2 + $0x468] sm:$0xff]
  %v1088 = vld [vmem:[%s2 + $0x470] sm:$0xff]
  %v1089 = vld [vmem:[%s2 + $0x478] sm:$0xff]
  %1090 = vmatpush.msra.mxu0 %v1087
  %1091 = vmatpush.msra.mxu0 %v1084
  %1092 = vmatpush.msra.mxu0 %v1081
  %1093 = vmatpush.msra.mxu0 %v1078
  %1094 = vmatpush.msra.mxu0 %v1075
  %1095 = vmatpush.msra.mxu0 %v1072
  %1096 = vmatpush.msra.mxu0 %v1069
  %1097 = vmatpush.msra.mxu0 %v1066
  %1098 = vmatpush.msra.mxu0 %v1063
  %1099 = vmatpush.msra.mxu0 %v1060
  %1100 = vmatpush.msra.mxu0 %v1057
  %1101 = vmatpush.msra.mxu0 %v1054
  %1102 = vmatpush.msra.mxu0 %v1051
  %1103 = vmatpush.msra.mxu0 %v1048
  %1104 = vmatpush.msra.mxu0 %v1045
  %1105 = vmatpush.msra.mxu0 %v1042
  %1106 = vmatmul.f32.gmra.mxu0 %v1041
  %v1107 = vpop.f32.mrf.mxu0
  %v1108 = vadd.f32 0.0, %v1107
  %1109 = vdwg.mxu0
  %1110 = vmatpush.msra.mxu0 %v1088
  %1111 = vmatpush.msra.mxu0 %v1085
  %1112 = vmatpush.msra.mxu0 %v1082
  %1113 = vmatpush.msra.mxu0 %v1079
  %1114 = vmatpush.msra.mxu0 %v1076
  %1115 = vmatpush.msra.mxu0 %v1073
  %1116 = vmatpush.msra.mxu0 %v1070
  %1117 = vmatpush.msra.mxu0 %v1067
  %1118 = vmatpush.msra.mxu0 %v1064
  %1119 = vmatpush.msra.mxu0 %v1061
  %1120 = vmatpush.msra.mxu0 %v1058
  %1121 = vmatpush.msra.mxu0 %v1055
  %1122 = vmatpush.msra.mxu0 %v1052
  %1123 = vmatpush.msra.mxu0 %v1049
  %1124 = vmatpush.msra.mxu0 %v1046
  %1125 = vmatpush.msra.mxu0 %v1043
  %1126 = vmatmul.f32.gmra.mxu0 %v1041
  %v1127 = vpop.f32.mrf.mxu0
  %v1128 = vadd.f32 0.0, %v1127
  %1129 = vdwg.mxu0
  %1130 = vmatpush.msra.mxu0 %v1089
  %1131 = vmatpush.msra.mxu0 %v1086
  %1132 = vmatpush.msra.mxu0 %v1083
  %1133 = vmatpush.msra.mxu0 %v1080
  %1134 = vmatpush.msra.mxu0 %v1077
  %1135 = vmatpush.msra.mxu0 %v1074
  %1136 = vmatpush.msra.mxu0 %v1071
  %1137 = vmatpush.msra.mxu0 %v1068
  %1138 = vmatpush.msra.mxu0 %v1065
  %1139 = vmatpush.msra.mxu0 %v1062
  %1140 = vmatpush.msra.mxu0 %v1059
  %1141 = vmatpush.msra.mxu0 %v1056
  %1142 = vmatpush.msra.mxu0 %v1053
  %1143 = vmatpush.msra.mxu0 %v1050
  %1144 = vmatpush.msra.mxu0 %v1047
  %1145 = vmatpush.msra.mxu0 %v1044
  %1146 = vmatmul.f32.gmra.mxu0 %v1041
  %v1147 = vpop.f32.mrf.mxu0
  %v1148 = vadd.f32 0.0, %v1147
  %1149 = vdwg.mxu0
  %v1150 = vld [vmem:[%s3 + $0x60] sm:$0x7f]
  %v1151 = vld [vmem:[%s3 + $0x68] sm:$0x7f]
  %vm1152 = vcmask 23552
  %v1154 = vsel %vm1152, %v1151, 0
  %v1157 = vsel %vm979, %v1128, 0
  %1159 = vmatpush.msra.mxu0 0.0
  %1160 = vmatpush.msra.mxu0 0.0
  %1161 = vmatpush.msra.mxu0 0.0
  %1162 = vmatpush.msra.mxu0 0.0
  %1163 = vmatpush.msra.mxu0 0.0
  %1164 = vmatpush.msra.mxu0 0.0
  %1165 = vmatpush.msra.mxu0 0.0
  %1166 = vmatpush.msra.mxu0 0.0
  %1167 = vmatpush.msra.mxu0 0.0
  %1168 = vmatpush.msra.mxu0 0.0
  %1169 = vmatpush.msra.mxu0 0.0
  %1170 = vmatpush.msra.mxu0 0.0
  %1171 = vmatpush.msra.mxu0 0.0
  %1172 = vmatpush.msra.mxu0 0.0
  %1173 = vmatpush.msra.mxu0 0.0
  %1174 = vmatpush.msra.mxu0 %v1157
  %1175 = vmatmul.f32.gmra.mxu0 %v1154
  %v1176 = vpop.f32.mrf.mxu0
  %v1177 = vadd.f32 0.0, %v1176
  %1178 = vdwg.mxu0
  %v1180 = vsel %vm1152, %v1150, 0
  %v1183 = vsel %vm979, %v1108, 0
  %1185 = vmatpush.msra.mxu0 0.0
  %1186 = vmatpush.msra.mxu0 0.0
  %1187 = vmatpush.msra.mxu0 0.0
  %1188 = vmatpush.msra.mxu0 0.0
  %1189 = vmatpush.msra.mxu0 0.0
  %1190 = vmatpush.msra.mxu0 0.0
  %1191 = vmatpush.msra.mxu0 0.0
  %1192 = vmatpush.msra.mxu0 0.0
  %1193 = vmatpush.msra.mxu0 0.0
  %1194 = vmatpush.msra.mxu0 0.0
  %1195 = vmatpush.msra.mxu0 0.0
  %1196 = vmatpush.msra.mxu0 0.0
  %1197 = vmatpush.msra.mxu0 0.0
  %1198 = vmatpush.msra.mxu0 0.0
  %1199 = vmatpush.msra.mxu0 0.0
  %1200 = vmatpush.msra.mxu0 %v1183
  %1201 = vmatmul.f32.gmra.mxu0 %v1180
  %v1202 = vpop.f32.mrf.mxu0
  %v1203 = vadd.f32 %v1177, %v1202
  %1204 = vdwg.mxu0
  %v1205 = vld [vmem:[%s3 + $0x70] sm:$0x7f]
  %v1207 = vsel %vm1152, %v1205, 0
  %v1210 = vsel %vm979, %v1148, 0
  %1212 = vmatpush.msra.mxu0 0.0
  %1213 = vmatpush.msra.mxu0 0.0
  %1214 = vmatpush.msra.mxu0 0.0
  %1215 = vmatpush.msra.mxu0 0.0
  %1216 = vmatpush.msra.mxu0 0.0
  %1217 = vmatpush.msra.mxu0 0.0
  %1218 = vmatpush.msra.mxu0 0.0
  %1219 = vmatpush.msra.mxu0 0.0
  %1220 = vmatpush.msra.mxu0 0.0
  %1221 = vmatpush.msra.mxu0 0.0
  %1222 = vmatpush.msra.mxu0 0.0
  %1223 = vmatpush.msra.mxu0 0.0
  %1224 = vmatpush.msra.mxu0 0.0
  %1225 = vmatpush.msra.mxu0 0.0
  %1226 = vmatpush.msra.mxu0 0.0
  %1227 = vmatpush.msra.mxu0 %v1210
  %1228 = vmatmul.f32.gmra.mxu0 %v1207
  %v1229 = vpop.f32.mrf.mxu0
  %v1230 = vadd.f32 0.0, %v1229
  %1231 = vdwg.mxu0
  %v1232 = vadd.f32 %v1203, %v1230
  %v1233 = vld [vmem:[%s4 + $0x15] ss:$0 sm:$0xff]
  %v1234 = vadd.f32 %v1232, %v1233
  %v1235 = vld [vmem:[%s4 + $0x16] ss:$0 sm:$0xff]
  %v1236 = vld [vmem:[%s4 + $0x17] ss:$0 sm:$0xff]
  %v1237 = vld [vmem:[%s4 + $0x20] ss:$0 sm:$0xff]
  %v1238 = vsel %vm442, %v1234, 0.0
  %v1239 = vrot.slane %v1238, 4
  %v1240 = vadd.f32 %v1238, %v1239
  %v1241 = vrot.slane %v1240, 2
  %v1242 = vadd.f32 %v1240, %v1241
  %v1243 = vrot.slane %v1242, 1
  %v1244 = vadd.f32 %v1242, %v1243
  %v1245 = vmul.f32 %v1234, %v1234
  %v1246 = vsel %vm442, %v1245, 0.0
  %v1247 = vrot.slane %v1246, 4
  %v1248 = vadd.f32 %v1246, %v1247
  %v1249 = vrot.slane %v1248, 2
  %v1250 = vadd.f32 %v1248, %v1249
  %v1251 = vrot.slane %v1250, 1
  %v1252 = vadd.f32 %v1250, %v1251
  %v1253 = vsel %vm461, %v1244, %v1252
  %1254 = vmatpush.msra.mxu0 %v35
  %1255 = vmatpush.msra.mxu0 %v34
  %1256 = vmatpush.msra.mxu0 %v33
  %1257 = vmatpush.msra.mxu0 %v32
  %1258 = vmatpush.msra.mxu0 %v31
  %1259 = vmatpush.msra.mxu0 %v30
  %1260 = vmatpush.msra.mxu0 %v29
  %1261 = vmatpush.msra.mxu0 %v28
  %1262 = vmatpush.msra.mxu0 %v27
  %1263 = vmatpush.msra.mxu0 %v26
  %1264 = vmatpush.msra.mxu0 %v25
  %1265 = vmatpush.msra.mxu0 %v24
  %1266 = vmatpush.msra.mxu0 %v23
  %1267 = vmatpush.msra.mxu0 %v22
  %1268 = vmatpush.msra.mxu0 %v21
  %1269 = vmatpush.msra.mxu0 %v20
  %1270 = vmatmul.f32.gmra.mxu0 %v1253
  %v1271 = vpop.f32.mrf.mxu0
  %v1272 = vadd.f32 0.0, %v1271
  %1273 = vdwg.mxu0
  %v1274 = vmul.f32 %v1272, 0.017857144
  %v1275 = vmul.f32 %v1274, %v1274
  %v1277 = vrot.slane %v1275, 7
  %v1279 = vsub.f32 %v1274, %v1277
  %v1280 = vperm.slane %v1274, 0
  %v1281 = vsub.f32 %v1234, %v1280
  %v1282 = vadd.f32 %v1279, 1e-05
  %v1283 = vrsqrt.pop %v1282
  %v1284 = vmul.f32 %v1283, %v1282
  %v1285 = vmul.f32 %v1284, %v1283
  %v1286 = vmul.f32 0.5, %v1285
  %v1287 = vsub.f32 1.5, %v1286
  %v1288 = vmul.f32 %v1283, %v1287
  %vm1289 = vweird.f32 %v1282
  %vm1290 = vweird.f32 %v1283
  %vm1291 = vmor %vm1289, %vm1290
  %v1292 = vsel %vm1291, %v1283, %v1288
  %v1293 = vperm.slane %v1292, 1
  %v1294 = vmul.f32 %v1281, %v1293
  %v1295 = vmul.f32 %v1294, %v1235
  %v1296 = vadd.f32 %v1295, %v1236
  %vm1297 = vcmp.ge.f32.partialorder %v1296, 0.0
  %v1298 = vmul.f32 %v1237, %v1296
  %v1299 = vsel %vm1297, %v1296, %v1298
  %v1300 = vld [vmem:[%s2 + $0x480] sm:$0xff]
  %v1301 = vld [vmem:[%s2 + $0x488] sm:$0xff]
  %v1302 = vld [vmem:[%s2 + $0x490] sm:$0xff]
  %v1303 = vld [vmem:[%s2 + $0x498] sm:$0xff]
  %v1304 = vld [vmem:[%s2 + $0x4a0] sm:$0xff]
  %v1305 = vld [vmem:[%s2 + $0x4a8] sm:$0xff]
  %v1306 = vld [vmem:[%s2 + $0x4b0] sm:$0xff]
  %v1307 = vld [vmem:[%s2 + $0x4b8] sm:$0xff]
  %v1308 = vld [vmem:[%s2 + $0x4c0] sm:$0xff]
  %v1309 = vld [vmem:[%s2 + $0x4c8] sm:$0xff]
  %v1310 = vld [vmem:[%s2 + $0x4d0] sm:$0xff]
  %v1311 = vld [vmem:[%s2 + $0x4d8] sm:$0xff]
  %v1312 = vld [vmem:[%s2 + $0x4e0] sm:$0xff]
  %v1313 = vld [vmem:[%s2 + $0x4e8] sm:$0xff]
  %v1314 = vld [vmem:[%s2 + $0x4f0] sm:$0xff]
  %v1315 = vld [vmem:[%s2 + $0x4f8] sm:$0xff]
  %v1316 = vld [vmem:[%s2 + $0x500] sm:$0xff]
  %v1317 = vld [vmem:[%s2 + $0x508] sm:$0xff]
  %v1318 = vld [vmem:[%s2 + $0x510] sm:$0xff]
  %v1319 = vld [vmem:[%s2 + $0x518] sm:$0xff]
  %v1320 = vld [vmem:[%s2 + $0x520] sm:$0xff]
  %v1321 = vld [vmem:[%s2 + $0x528] sm:$0xff]
  %v1322 = vld [vmem:[%s2 + $0x530] sm:$0xff]
  %v1323 = vld [vmem:[%s2 + $0x538] sm:$0xff]
  %v1324 = vld [vmem:[%s2 + $0x540] sm:$0xff]
  %v1325 = vld [vmem:[%s2 + $0x548] sm:$0xff]
  %v1326 = vld [vmem:[%s2 + $0x550] sm:$0xff]
  %v1327 = vld [vmem:[%s2 + $0x558] sm:$0xff]
  %v1328 = vld [vmem:[%s2 + $0x560] sm:$0xff]
  %v1329 = vld [vmem:[%s2 + $0x568] sm:$0xff]
  %v1330 = vld [vmem:[%s2 + $0x570] sm:$0xff]
  %v1331 = vld [vmem:[%s2 + $0x578] sm:$0xff]
  %v1332 = vld [vmem:[%s2 + $0x580] sm:$0xff]
  %v1333 = vld [vmem:[%s2 + $0x588] sm:$0xff]
  %v1334 = vld [vmem:[%s2 + $0x590] sm:$0xff]
  %v1335 = vld [vmem:[%s2 + $0x598] sm:$0xff]
  %v1336 = vld [vmem:[%s2 + $0x5a0] sm:$0xff]
  %v1337 = vld [vmem:[%s2 + $0x5a8] sm:$0xff]
  %v1338 = vld [vmem:[%s2 + $0x5b0] sm:$0xff]
  %v1339 = vld [vmem:[%s2 + $0x5b8] sm:$0xff]
  %v1340 = vld [vmem:[%s2 + $0x5c0] sm:$0xff]
  %v1341 = vld [vmem:[%s2 + $0x5c8] sm:$0xff]
  %v1342 = vld [vmem:[%s2 + $0x5d0] sm:$0xff]
  %v1343 = vld [vmem:[%s2 + $0x5d8] sm:$0xff]
  %v1344 = vld [vmem:[%s2 + $0x5e0] sm:$0xff]
  %v1345 = vld [vmem:[%s2 + $0x5e8] sm:$0xff]
  %v1346 = vld [vmem:[%s2 + $0x5f0] sm:$0xff]
  %v1347 = vld [vmem:[%s2 + $0x5f8] sm:$0xff]
  %v1348 = vld [vmem:[%s2 + $0x600] sm:$0xff]
  %v1349 = vld [vmem:[%s2 + $0x608] sm:$0xff]
  %v1350 = vld [vmem:[%s2 + $0x610] sm:$0xff]
  %v1351 = vld [vmem:[%s2 + $0x618] sm:$0xff]
  %v1352 = vld [vmem:[%s2 + $0x620] sm:$0xff]
  %v1353 = vld [vmem:[%s2 + $0x628] sm:$0xff]
  %v1354 = vld [vmem:[%s2 + $0x630] sm:$0xff]
  %v1355 = vld [vmem:[%s2 + $0x638] sm:$0xff]
  %v1356 = vld [vmem:[%s2 + $0x640] sm:$0xff]
  %v1357 = vld [vmem:[%s2 + $0x648] sm:$0xff]
  %v1358 = vld [vmem:[%s2 + $0x650] sm:$0xff]
  %v1359 = vld [vmem:[%s2 + $0x658] sm:$0xff]
  %v1360 = vld [vmem:[%s2 + $0x660] sm:$0xff]
  %v1361 = vld [vmem:[%s2 + $0x668] sm:$0xff]
  %v1362 = vld [vmem:[%s2 + $0x670] sm:$0xff]
  %v1363 = vld [vmem:[%s2 + $0x678] sm:$0xff]
  %v1364 = vld [vmem:[%s2 + $0x680] sm:$0xff]
  %v1365 = vld [vmem:[%s2 + $0x688] sm:$0xff]
  %v1366 = vld [vmem:[%s2 + $0x690] sm:$0xff]
  %v1367 = vld [vmem:[%s2 + $0x698] sm:$0xff]
  %v1368 = vld [vmem:[%s2 + $0x6a0] sm:$0xff]
  %v1369 = vld [vmem:[%s2 + $0x6a8] sm:$0xff]
  %v1370 = vld [vmem:[%s2 + $0x6b0] sm:$0xff]
  %v1371 = vld [vmem:[%s2 + $0x6b8] sm:$0xff]
  %v1372 = vld [vmem:[%s2 + $0x6c0] sm:$0xff]
  %v1373 = vld [vmem:[%s2 + $0x6c8] sm:$0xff]
  %v1374 = vld [vmem:[%s2 + $0x6d0] sm:$0xff]
  %v1375 = vld [vmem:[%s2 + $0x6d8] sm:$0xff]
  %v1376 = vld [vmem:[%s2 + $0x6e0] sm:$0xff]
  %v1377 = vld [vmem:[%s2 + $0x6e8] sm:$0xff]
  %v1378 = vld [vmem:[%s2 + $0x6f0] sm:$0xff]
  %v1379 = vld [vmem:[%s2 + $0x6f8] sm:$0xff]
  %v1380 = vld [vmem:[%s2 + $0x700] sm:$0xff]
  %v1381 = vld [vmem:[%s2 + $0x708] sm:$0xff]
  %v1382 = vld [vmem:[%s2 + $0x710] sm:$0xff]
  %v1383 = vld [vmem:[%s2 + $0x718] sm:$0xff]
  %v1384 = vld [vmem:[%s2 + $0x720] sm:$0xff]
  %v1385 = vld [vmem:[%s2 + $0x728] sm:$0xff]
  %v1386 = vld [vmem:[%s2 + $0x730] sm:$0xff]
  %v1387 = vld [vmem:[%s2 + $0x738] sm:$0xff]
  %v1388 = vld [vmem:[%s2 + $0x740] sm:$0xff]
  %v1389 = vld [vmem:[%s2 + $0x748] sm:$0xff]
  %v1390 = vld [vmem:[%s2 + $0x750] sm:$0xff]
  %v1391 = vld [vmem:[%s2 + $0x758] sm:$0xff]
  %v1392 = vld [vmem:[%s2 + $0x760] sm:$0xff]
  %v1393 = vld [vmem:[%s2 + $0x768] sm:$0xff]
  %v1394 = vld [vmem:[%s2 + $0x770] sm:$0xff]
  %v1395 = vld [vmem:[%s2 + $0x778] sm:$0xff]
  %1396 = vmatpush.msra.mxu0 %v1393
  %1397 = vmatpush.msra.mxu0 %v1390
  %1398 = vmatpush.msra.mxu0 %v1387
  %1399 = vmatpush.msra.mxu0 %v1384
  %1400 = vmatpush.msra.mxu0 %v1381
  %1401 = vmatpush.msra.mxu0 %v1378
  %1402 = vmatpush.msra.mxu0 %v1375
  %1403 = vmatpush.msra.mxu0 %v1372
  %1404 = vmatpush.msra.mxu0 %v1369
  %1405 = vmatpush.msra.mxu0 %v1366
  %1406 = vmatpush.msra.mxu0 %v1363
  %1407 = vmatpush.msra.mxu0 %v1360
  %1408 = vmatpush.msra.mxu0 %v1357
  %1409 = vmatpush.msra.mxu0 %v1354
  %1410 = vmatpush.msra.mxu0 %v1351
  %1411 = vmatpush.msra.mxu0 %v1348
  %1412 = vmatmul.f32.gmra.mxu0 %v782
  %v1413 = vpop.f32.mrf.mxu0
  %v1414 = vadd.f32 0.0, %v1413
  %1415 = vdwg.mxu0
  %1416 = vmatpush.msra.mxu0 %v1394
  %1417 = vmatpush.msra.mxu0 %v1391
  %1418 = vmatpush.msra.mxu0 %v1388
  %1419 = vmatpush.msra.mxu0 %v1385
  %1420 = vmatpush.msra.mxu0 %v1382
  %1421 = vmatpush.msra.mxu0 %v1379
  %1422 = vmatpush.msra.mxu0 %v1376
  %1423 = vmatpush.msra.mxu0 %v1373
  %1424 = vmatpush.msra.mxu0 %v1370
  %1425 = vmatpush.msra.mxu0 %v1367
  %1426 = vmatpush.msra.mxu0 %v1364
  %1427 = vmatpush.msra.mxu0 %v1361
  %1428 = vmatpush.msra.mxu0 %v1358
  %1429 = vmatpush.msra.mxu0 %v1355
  %1430 = vmatpush.msra.mxu0 %v1352
  %1431 = vmatpush.msra.mxu0 %v1349
  %1432 = vmatmul.f32.gmra.mxu0 %v782
  %v1433 = vpop.f32.mrf.mxu0
  %v1434 = vadd.f32 0.0, %v1433
  %1435 = vdwg.mxu0
  %1436 = vmatpush.msra.mxu0 %v1395
  %1437 = vmatpush.msra.mxu0 %v1392
  %1438 = vmatpush.msra.mxu0 %v1389
  %1439 = vmatpush.msra.mxu0 %v1386
  %1440 = vmatpush.msra.mxu0 %v1383
  %1441 = vmatpush.msra.mxu0 %v1380
  %1442 = vmatpush.msra.mxu0 %v1377
  %1443 = vmatpush.msra.mxu0 %v1374
  %1444 = vmatpush.msra.mxu0 %v1371
  %1445 = vmatpush.msra.mxu0 %v1368
  %1446 = vmatpush.msra.mxu0 %v1365
  %1447 = vmatpush.msra.mxu0 %v1362
  %1448 = vmatpush.msra.mxu0 %v1359
  %1449 = vmatpush.msra.mxu0 %v1356
  %1450 = vmatpush.msra.mxu0 %v1353
  %1451 = vmatpush.msra.mxu0 %v1350
  %1452 = vmatmul.f32.gmra.mxu0 %v782
  %v1453 = vpop.f32.mrf.mxu0
  %v1454 = vadd.f32 0.0, %v1453
  %1455 = vdwg.mxu0
  %1456 = vmatpush.msra.mxu0 %v1345
  %1457 = vmatpush.msra.mxu0 %v1342
  %1458 = vmatpush.msra.mxu0 %v1339
  %1459 = vmatpush.msra.mxu0 %v1336
  %1460 = vmatpush.msra.mxu0 %v1333
  %1461 = vmatpush.msra.mxu0 %v1330
  %1462 = vmatpush.msra.mxu0 %v1327
  %1463 = vmatpush.msra.mxu0 %v1324
  %1464 = vmatpush.msra.mxu0 %v1321
  %1465 = vmatpush.msra.mxu0 %v1318
  %1466 = vmatpush.msra.mxu0 %v1315
  %1467 = vmatpush.msra.mxu0 %v1312
  %1468 = vmatpush.msra.mxu0 %v1309
  %1469 = vmatpush.msra.mxu0 %v1306
  %1470 = vmatpush.msra.mxu0 %v1303
  %1471 = vmatpush.msra.mxu0 %v1300
  %1472 = vmatmul.f32.gmra.mxu0 %v1299
  %v1473 = vpop.f32.mrf.mxu0
  %v1474 = vadd.f32 %v1414, %v1473
  %1475 = vdwg.mxu0
  %1476 = vmatpush.msra.mxu0 %v1346
  %1477 = vmatpush.msra.mxu0 %v1343
  %1478 = vmatpush.msra.mxu0 %v1340
  %1479 = vmatpush.msra.mxu0 %v1337
  %1480 = vmatpush.msra.mxu0 %v1334
  %1481 = vmatpush.msra.mxu0 %v1331
  %1482 = vmatpush.msra.mxu0 %v1328
  %1483 = vmatpush.msra.mxu0 %v1325
  %1484 = vmatpush.msra.mxu0 %v1322
  %1485 = vmatpush.msra.mxu0 %v1319
  %1486 = vmatpush.msra.mxu0 %v1316
  %1487 = vmatpush.msra.mxu0 %v1313
  %1488 = vmatpush.msra.mxu0 %v1310
  %1489 = vmatpush.msra.mxu0 %v1307
  %1490 = vmatpush.msra.mxu0 %v1304
  %1491 = vmatpush.msra.mxu0 %v1301
  %1492 = vmatmul.f32.gmra.mxu0 %v1299
  %v1493 = vpop.f32.mrf.mxu0
  %v1494 = vadd.f32 %v1434, %v1493
  %1495 = vdwg.mxu0
  %1496 = vmatpush.msra.mxu0 %v1347
  %1497 = vmatpush.msra.mxu0 %v1344
  %1498 = vmatpush.msra.mxu0 %v1341
  %1499 = vmatpush.msra.mxu0 %v1338
  %1500 = vmatpush.msra.mxu0 %v1335
  %1501 = vmatpush.msra.mxu0 %v1332
  %1502 = vmatpush.msra.mxu0 %v1329
  %1503 = vmatpush.msra.mxu0 %v1326
  %1504 = vmatpush.msra.mxu0 %v1323
  %1505 = vmatpush.msra.mxu0 %v1320
  %1506 = vmatpush.msra.mxu0 %v1317
  %1507 = vmatpush.msra.mxu0 %v1314
  %1508 = vmatpush.msra.mxu0 %v1311
  %1509 = vmatpush.msra.mxu0 %v1308
  %1510 = vmatpush.msra.mxu0 %v1305
  %1511 = vmatpush.msra.mxu0 %v1302
  %1512 = vmatmul.f32.gmra.mxu0 %v1299
  %v1513 = vpop.f32.mrf.mxu0
  %v1514 = vadd.f32 %v1454, %v1513
  %1515 = vdwg.mxu0
  %v1516 = vld [vmem:[%s3 + $0x78] sm:$0xff]
  %v1517 = vld [vmem:[%s3 + $0x80] sm:$0x7f]
  %v1518 = vld [vmem:[%s3 + $0x88] sm:$0xff]
  %v1519 = vld [vmem:[%s3 + $0x90] sm:$0x7f]
  %v1521 = vsel %vm893, %v1518, 0
  %v1524 = vsel %vm893, %v1519, 0
  %v1527 = vsel %vm442, %v1494, 0
  %1529 = vmatpush.msra.mxu0 0.0
  %1530 = vmatpush.msra.mxu0 0.0
  %1531 = vmatpush.msra.mxu0 0.0
  %1532 = vmatpush.msra.mxu0 0.0
  %1533 = vmatpush.msra.mxu0 0.0
  %1534 = vmatpush.msra.mxu0 0.0
  %1535 = vmatpush.msra.mxu0 0.0
  %1536 = vmatpush.msra.mxu0 0.0
  %1537 = vmatpush.msra.mxu0 0.0
  %1538 = vmatpush.msra.mxu0 0.0
  %1539 = vmatpush.msra.mxu0 0.0
  %1540 = vmatpush.msra.mxu0 0.0
  %1541 = vmatpush.msra.mxu0 0.0
  %1542 = vmatpush.msra.mxu0 0.0
  %1543 = vmatpush.msra.mxu0 0.0
  %1544 = vmatpush.msra.mxu0 %v1527
  %1545 = vmatmul.f32.gmra.mxu0 %v1521
  %v1546 = vpop.f32.mrf.mxu0
  %v1547 = vadd.f32 0.0, %v1546
  %1548 = vmatmul.f32.gmra.mxu0 %v1524
  %v1549 = vpop.f32.mrf.mxu0
  %v1550 = vadd.f32 0.0, %v1549
  %1551 = vdwg.mxu0
  %v1553 = vsel %vm893, %v1516, 0
  %v1556 = vsel %vm893, %v1517, 0
  %v1559 = vsel %vm442, %v1474, 0
  %1561 = vmatpush.msra.mxu0 0.0
  %1562 = vmatpush.msra.mxu0 0.0
  %1563 = vmatpush.msra.mxu0 0.0
  %1564 = vmatpush.msra.mxu0 0.0
  %1565 = vmatpush.msra.mxu0 0.0
  %1566 = vmatpush.msra.mxu0 0.0
  %1567 = vmatpush.msra.mxu0 0.0
  %1568 = vmatpush.msra.mxu0 0.0
  %1569 = vmatpush.msra.mxu0 0.0
  %1570 = vmatpush.msra.mxu0 0.0
  %1571 = vmatpush.msra.mxu0 0.0
  %1572 = vmatpush.msra.mxu0 0.0
  %1573 = vmatpush.msra.mxu0 0.0
  %1574 = vmatpush.msra.mxu0 0.0
  %1575 = vmatpush.msra.mxu0 0.0
  %1576 = vmatpush.msra.mxu0 %v1559
  %1577 = vmatmul.f32.gmra.mxu0 %v1553
  %v1578 = vpop.f32.mrf.mxu0
  %v1579 = vadd.f32 %v1547, %v1578
  %1580 = vmatmul.f32.gmra.mxu0 %v1556
  %v1581 = vpop.f32.mrf.mxu0
  %v1582 = vadd.f32 %v1550, %v1581
  %1583 = vdwg.mxu0
  %v1584 = vld [vmem:[%s3 + $0x98] sm:$0xff]
  %v1585 = vld [vmem:[%s3 + $0xa0] sm:$0x7f]
  %v1587 = vsel %vm893, %v1584, 0
  %v1590 = vsel %vm893, %v1585, 0
  %v1593 = vsel %vm442, %v1514, 0
  %1595 = vmatpush.msra.mxu0 0.0
  %1596 = vmatpush.msra.mxu0 0.0
  %1597 = vmatpush.msra.mxu0 0.0
  %1598 = vmatpush.msra.mxu0 0.0
  %1599 = vmatpush.msra.mxu0 0.0
  %1600 = vmatpush.msra.mxu0 0.0
  %1601 = vmatpush.msra.mxu0 0.0
  %1602 = vmatpush.msra.mxu0 0.0
  %1603 = vmatpush.msra.mxu0 0.0
  %1604 = vmatpush.msra.mxu0 0.0
  %1605 = vmatpush.msra.mxu0 0.0
  %1606 = vmatpush.msra.mxu0 0.0
  %1607 = vmatpush.msra.mxu0 0.0
  %1608 = vmatpush.msra.mxu0 0.0
  %1609 = vmatpush.msra.mxu0 0.0
  %1610 = vmatpush.msra.mxu0 %v1593
  %1611 = vmatmul.f32.gmra.mxu0 %v1587
  %v1612 = vpop.f32.mrf.mxu0
  %v1613 = vadd.f32 0.0, %v1612
  %1614 = vmatmul.f32.gmra.mxu0 %v1590
  %v1615 = vpop.f32.mrf.mxu0
  %v1616 = vadd.f32 0.0, %v1615
  %1617 = vdwg.mxu0
  %v1618 = vadd.f32 %v1579, %v1613
  %v1619 = vadd.f32 %v1582, %v1616
  %v1620 = vld [vmem:[%s4 + $0x21] ss:$0 sm:$0xff]
  %v1621 = vadd.f32 %v1618, %v1620
  %v1622 = vadd.f32 %v1619, %v1620
  %v1623 = vld [vmem:[%s4 + $0x22] ss:$0 sm:$0xff]
  %v1624 = vld [vmem:[%s4 + $0x23] ss:$0 sm:$0xff]
  %v1625 = vld [vmem:[%s4 + $0x24] ss:$0 sm:$0xff]
  %v1626 = vsel %vm442, %v1622, 0.0
  %v1627 = vadd.f32 %v1621, %v1626
  %v1628 = vrot.slane %v1627, 4
  %v1629 = vadd.f32 %v1627, %v1628
  %v1630 = vrot.slane %v1629, 2
  %v1631 = vadd.f32 %v1629, %v1630
  %v1632 = vrot.slane %v1631, 1
  %v1633 = vadd.f32 %v1631, %v1632
  %v1634 = vmul.f32 %v1621, %v1621
  %v1635 = vmul.f32 %v1622, %v1622
  %v1636 = vsel %vm442, %v1635, 0.0
  %v1637 = vadd.f32 %v1634, %v1636
  %v1638 = vrot.slane %v1637, 4
  %v1639 = vadd.f32 %v1637, %v1638
  %v1640 = vrot.slane %v1639, 2
  %v1641 = vadd.f32 %v1639, %v1640
  %v1642 = vrot.slane %v1641, 1
  %v1643 = vadd.f32 %v1641, %v1642
  %v1644 = vsel %vm461, %v1633, %v1643
  %1645 = vmatpush.msra.mxu0 %v35
  %1646 = vmatpush.msra.mxu0 %v34
  %1647 = vmatpush.msra.mxu0 %v33
  %1648 = vmatpush.msra.mxu0 %v32
  %1649 = vmatpush.msra.mxu0 %v31
  %1650 = vmatpush.msra.mxu0 %v30
  %1651 = vmatpush.msra.mxu0 %v29
  %1652 = vmatpush.msra.mxu0 %v28
  %1653 = vmatpush.msra.mxu0 %v27
  %1654 = vmatpush.msra.mxu0 %v26
  %1655 = vmatpush.msra.mxu0 %v25
  %1656 = vmatpush.msra.mxu0 %v24
  %1657 = vmatpush.msra.mxu0 %v23
  %1658 = vmatpush.msra.mxu0 %v22
  %1659 = vmatpush.msra.mxu0 %v21
  %1660 = vmatpush.msra.mxu0 %v20
  %1661 = vmatmul.f32.gmra.mxu0 %v1644
  %v1662 = vpop.f32.mrf.mxu0
  %v1663 = vadd.f32 0.0, %v1662
  %1664 = vdwg.mxu0
  %v1665 = vmul.f32 %v1663, 0.008333334
  %v1666 = vmul.f32 %v1665, %v1665
  %v1668 = vrot.slane %v1666, 7
  %v1670 = vsub.f32 %v1665, %v1668
  %v1671 = vperm.slane %v1665, 0
  %v1672 = vsub.f32 %v1621, %v1671
  %v1673 = vsub.f32 %v1622, %v1671
  %v1674 = vadd.f32 %v1670, 1e-05
  %v1675 = vrsqrt.pop %v1674
  %v1676 = vmul.f32 %v1675, %v1674
  %v1677 = vmul.f32 %v1676, %v1675
  %v1678 = vmul.f32 0.5, %v1677
  %v1679 = vsub.f32 1.5, %v1678
  %v1680 = vmul.f32 %v1675, %v1679
  %vm1681 = vweird.f32 %v1674
  %vm1682 = vweird.f32 %v1675
  %vm1683 = vmor %vm1681, %vm1682
  %v1684 = vsel %vm1683, %v1675, %v1680
  %v1685 = vperm.slane %v1684, 1
  %v1686 = vmul.f32 %v1672, %v1685
  %v1687 = vmul.f32 %v1673, %v1685
  %v1688 = vmul.f32 %v1686, %v1623
  %v1689 = vmul.f32 %v1687, %v1623
  %v1690 = vadd.f32 %v1688, %v1624
  %v1691 = vadd.f32 %v1689, %v1624
  %vm1692 = vcmp.ge.f32.partialorder %v1690, 0.0
  %vm1693 = vcmp.ge.f32.partialorder %v1691, 0.0
  %v1694 = vmul.f32 %v1625, %v1690
  %v1695 = vmul.f32 %v1625, %v1691
  %v1696 = vsel %vm1692, %v1690, %v1694
  %v1697 = vsel %vm1693, %v1691, %v1695
  %v1698 = vadd.f32 %v514, %v1696
  %v1699 = vadd.f32 %v515, %v1697
  %1700 = vst [vmem:[%s5] sm:$0xff] %v1698
  %1701 = vst [vmem:[%s5 + $0x8] sm:$0x7f] %v1699
  // Predicated region
  $region22: #{en_unet_forward.1} parent=0 // pred_check
    _
  $region23: #{en_unet_forward.1} parent=0 // pred_check_branch
    %1703 = sbr.rel (0) target = $region25
  $region24: #{en_unet_forward.1} parent=0 // pred_region
    _
  $region25: #{en_unet_forward.1} parent=0 // pred_fallthru
    _
  // Predicated region
  $region26: #{en_unet_forward.1} parent=0 // pred_check
    _
  $region27: #{en_unet_forward.1} parent=0 // pred_check_branch
    %1705 = sbr.rel (0) target = $region29
  $region28: #{en_unet_forward.1} parent=0 // pred_region
    _
  $region29: #{en_unet_forward.1} parent=0 // pred_fallthru
    _

</llo_original>
